<compile_context>
chip_gen: v7x
topology: tpu7x:2x2x1
jax: 0.10.0
libtpu: 0.0.40
codegen_flags: <defaults>
</compile_context>

<pallas_src>
import jax
import jax.numpy as jnp
from jax.experimental import pallas as pl
from jax.experimental.pallas import tpu as pltpu  # noqa: F401 (TPU-specific tuning hooks)

# ----- static config (synthetic; stands in for checkpoint['config']) --------
B = 2            # batch
T = 8            # block_size / sequence length (power of 2 -> cheap mask math)
C = 32           # n_embd
H = 4            # n_head
D = C // H       # head_size = 8
HID = 4 * C      # FeedForward hidden = 128
BT = B * T       # fused row dimension = 16
EPS = 1e-5       # nn.LayerNorm default

assert T & (T - 1) == 0, "in-kernel same-sequence test uses power-of-two T"


# ---------------------------- Pallas kernel ---------------------------------
def _layernorm(x, g, b):
    mu = jnp.mean(x, axis=-1, keepdims=True)
    var = jnp.mean((x - mu) ** 2, axis=-1, keepdims=True)
    return (x - mu) * jax.lax.rsqrt(var + EPS) * g + b


def block_kernel(x_ref,
                 ln1g_ref, ln1b_ref,
                 wqkv_ref,               # (C, 3C): [Wq*D^-0.5 | Wk | Wv]
                 wproj_ref, bproj_ref,   # (C, C), (1, C)
                 ln2g_ref, ln2b_ref,
                 w1_ref, b1_ref,         # (C, HID), (1, HID)
                 w2_ref, b2_ref,         # (HID, C), (1, C)
                 o_ref):                 # (BT, C)
    x = x_ref[...]                                        # (BT, C)

    # Block-diagonal causal mask built in-kernel (no mask input / DMA).
    # Rows r, c are in the same length-T sequence iff (r ^ c) < T (T pow-2).
    r = jax.lax.broadcasted_iota(jnp.int32, (BT, BT), 0)
    c = jax.lax.broadcasted_iota(jnp.int32, (BT, BT), 1)
    mask = (r >= c) & (jnp.bitwise_xor(r, c) < T)         # (BT, BT) bool

    # ---- x = x + sa(ln1(x)) ----
    xn = _layernorm(x, ln1g_ref[...], ln1b_ref[...])

    # Single fused QKV matmul (one MXU pass); 1/sqrt(D) already folded into Wq.
    qkv = jnp.dot(xn, wqkv_ref[...], preferred_element_type=jnp.float32)   # (BT, 3C)

    heads = []
    for h in range(H):                                    # static unroll over heads
        q = qkv[:, h * D:(h + 1) * D]                     # (BT, D) static lane slices
        k = qkv[:, C + h * D:C + (h + 1) * D]
        v = qkv[:, 2 * C + h * D:2 * C + (h + 1) * D]
        s = jnp.dot(q, k.T, preferred_element_type=jnp.float32)            # (BT, BT)
        s = jnp.where(mask, s, -jnp.inf)
        s = s - jnp.max(s, axis=-1, keepdims=True)
        p = jnp.exp(s)
        p = p * pl.reciprocal(jnp.sum(p, axis=-1, keepdims=True), approx=False)
        # TODO(synk): attention/residual/ffwd dropout layers are identity in eval mode
        heads.append(jnp.dot(p, v, preferred_element_type=jnp.float32))    # (BT, D)

    # Dense output projection: concat heads (static lane relayout) + one matmul.
    o_cat = jnp.concatenate(heads, axis=-1)               # (BT, C)
    sa = jnp.dot(o_cat, wproj_ref[...], preferred_element_type=jnp.float32)
    x1 = x + sa + bproj_ref[...]

    # ---- x = x + ffwd(ln2(x))   (the PyTorch FeedForward module) ----
    xn2 = _layernorm(x1, ln2g_ref[...], ln2b_ref[...])
    hdn = jnp.dot(xn2, w1_ref[...], preferred_element_type=jnp.float32) + b1_ref[...]
    hdn = jnp.maximum(hdn, 0.0)                           # ReLU
    ff = jnp.dot(hdn, w2_ref[...], preferred_element_type=jnp.float32) + b2_ref[...]

    o_ref[...] = x1 + ff


def block_forward(x, params):
    (ln1g, ln1b, wq, wk, wv, wproj, bproj,
     ln2g, ln2b, w1, b1, w2, b2) = params

    # One-time layout plumbing in the wrapper:
    #  * fold the 1/sqrt(D) attention scale into Wq,
    #  * fuse Wq|Wk|Wv into one (C, 3C) weight so QKV is a single MXU pass.
    scale = float(D) ** -0.5
    wqkv = jnp.concatenate([wq * scale, wk, wv], axis=1)  # (C, 3C)

    x2d = x.reshape(BT, C)                                # fold batch into rows

    # No grid, no BlockSpecs: every operand is a single full-array VMEM block
    # (total working set ~70 KiB, far below VMEM on v5e/v6e/v7x).  When scaling
    # to real sizes: grid over BT rows (dimension_semantics=("parallel",)) for
    # v7x's two TensorCores, K-tile HID as an "arbitrary" axis, and set
    # pltpu.CompilerParams(vmem_limit_bytes=...) against v7x's 64 MiB VMEM.
    out = pl.pallas_call(
        block_kernel,
        out_shape=jax.ShapeDtypeStruct((BT, C), jnp.float32),
    )(x2d, ln1g, ln1b, wqkv, wproj, bproj, ln2g, ln2b, w1, b1, w2, b2)
    return out.reshape(B, T, C)


# --------------------------- pure-JAX reference ------------------------------
def block_ref(x, params):
    (ln1g, ln1b, wq, wk, wv, wproj, bproj,
     ln2g, ln2b, w1, b1, w2, b2) = params

    def ln(z, g, b_):
        mu = jnp.mean(z, axis=-1, keepdims=True)
        var = jnp.mean((z - mu) ** 2, axis=-1, keepdims=True)
        return (z - mu) * jax.lax.rsqrt(var + EPS) * g + b_

    mask = jnp.tril(jnp.ones((T, T), jnp.float32))
    xn = ln(x, ln1g, ln1b)
    q = xn @ wq
    k = xn @ wk
    v = xn @ wv
    qh = q.reshape(B, T, H, D).transpose(0, 2, 1, 3)
    kh = k.reshape(B, T, H, D).transpose(0, 2, 1, 3)
    vh = v.reshape(B, T, H, D).transpose(0, 2, 1, 3)
    s = jnp.einsum("bhtd,bhsd->bhts", qh, kh) * (float(D) ** -0.5)
    s = jnp.where(mask > 0.0, s, -jnp.inf)
    p = jax.nn.softmax(s, axis=-1)
    o = jnp.einsum("bhts,bhsd->bhtd", p, vh).transpose(0, 2, 1, 3).reshape(B, T, C)
    x1 = x + o @ wproj + bproj
    xn2 = ln(x1, ln2g, ln2b)
    ff = jnp.maximum(xn2 @ w1 + b1, 0.0) @ w2 + b2
    return x1 + ff


# --------------------------------- main --------------------------------------
if __name__ == "__main__":
    key = jax.random.PRNGKey(0)
    ks = jax.random.split(key, 16)

    def init(k, shape, scale=0.05):
        return jax.random.normal(k, shape, jnp.float32) * scale

    params = (
        jnp.ones((1, C), jnp.float32),        # ln1 gamma
        jnp.zeros((1, C), jnp.float32),       # ln1 beta
        init(ks[0], (C, C)),                  # Wq (heads concatenated on cols)
        init(ks[1], (C, C)),                  # Wk
        init(ks[2], (C, C)),                  # Wv
        init(ks[3], (C, C)),                  # proj W
        init(ks[4], (1, C)),                  # proj b
        jnp.ones((1, C), jnp.float32),        # ln2 gamma
        jnp.zeros((1, C), jnp.float32),       # ln2 beta
        init(ks[5], (C, HID)),                # ffwd W1
        init(ks[6], (1, HID)),                # ffwd b1
        init(ks[7], (HID, C)),                # ffwd W2
        init(ks[8], (1, C)),                  # ffwd b2
    )
    x = jax.random.normal(ks[9], (B, T, C), jnp.float32)

    out = jax.block_until_ready(block_forward(x, params))
    ref = jax.block_until_ready(block_ref(x, params))

    assert out.shape == (B, T, C)
    assert jnp.allclose(out, ref, atol=1e-5, rtol=1e-5), "mismatch vs reference"
    print("KERNEL_OK")
</pallas_src>

<mosaic_0001>
module attributes {stable_mosaic.version = 11 : i64} {
  func.func @block_kernel(%arg0: memref<16x32xf32, #tpu.memory_space<vmem>>, %arg1: memref<1x32xf32, #tpu.memory_space<vmem>>, %arg2: memref<1x32xf32, #tpu.memory_space<vmem>>, %arg3: memref<32x96xf32, #tpu.memory_space<vmem>>, %arg4: memref<32x32xf32, #tpu.memory_space<vmem>>, %arg5: memref<1x32xf32, #tpu.memory_space<vmem>>, %arg6: memref<1x32xf32, #tpu.memory_space<vmem>>, %arg7: memref<1x32xf32, #tpu.memory_space<vmem>>, %arg8: memref<32x128xf32, #tpu.memory_space<vmem>>, %arg9: memref<1x128xf32, #tpu.memory_space<vmem>>, %arg10: memref<128x32xf32, #tpu.memory_space<vmem>>, %arg11: memref<1x32xf32, #tpu.memory_space<vmem>>, %arg12: memref<16x32xf32, #tpu.memory_space<vmem>>) attributes {dimension_semantics = [], scalar_prefetch = 0 : i64, scratch_operands = 0 : i64, tpu.core_type = #tpu.core_type<tc>} {
    %c0 = arith.constant 0 : index
    %c0_0 = arith.constant 0 : index
    %0 = vector.load %arg0[%c0, %c0_0] : memref<16x32xf32, #tpu.memory_space<vmem>>, vector<16x32xf32>
    %1 = tpu.iota {dimensions = array<i32: 0>} : vector<16x16xi32>
    %2 = tpu.iota {dimensions = array<i32: 1>} : vector<16x16xi32>
    %3 = arith.cmpi sge, %1, %2 : vector<16x16xi32>
    %4 = arith.xori %1, %2 : vector<16x16xi32>
    %c8_i32 = arith.constant 8 : i32
    %5 = vector.broadcast %c8_i32 : i32 to vector<16x16xi32>
    %6 = arith.cmpi slt, %4, %5 : vector<16x16xi32>
    %7 = arith.andi %3, %6 : vector<16x16xi1>
    %c0_1 = arith.constant 0 : index
    %c0_2 = arith.constant 0 : index
    %8 = vector.load %arg1[%c0_1, %c0_2] : memref<1x32xf32, #tpu.memory_space<vmem>>, vector<1x32xf32>
    %c0_3 = arith.constant 0 : index
    %c0_4 = arith.constant 0 : index
    %9 = vector.load %arg2[%c0_3, %c0_4] : memref<1x32xf32, #tpu.memory_space<vmem>>, vector<1x32xf32>
    %cst = arith.constant dense<0.000000e+00> : vector<16xf32>
    %10 = vector.multi_reduction <add>, %0, %cst [1] : vector<16x32xf32> to vector<16xf32>
    %11 = vector.shape_cast %10 : vector<16xf32> to vector<16x1xf32>
    %cst_5 = arith.constant 3.200000e+01 : f32
    %12 = vector.broadcast %cst_5 : f32 to vector<16x1xf32>
    %13 = arith.divf %11, %12 : vector<16x1xf32>
    %14 = vector.broadcast %13 : vector<16x1xf32> to vector<16x32xf32>
    %15 = arith.subf %0, %14 : vector<16x32xf32>
    %16 = arith.mulf %15, %15 : vector<16x32xf32>
    %cst_6 = arith.constant dense<0.000000e+00> : vector<16xf32>
    %17 = vector.multi_reduction <add>, %16, %cst_6 [1] : vector<16x32xf32> to vector<16xf32>
    %18 = vector.shape_cast %17 : vector<16xf32> to vector<16x1xf32>
    %cst_7 = arith.constant 3.200000e+01 : f32
    %19 = vector.broadcast %cst_7 : f32 to vector<16x1xf32>
    %20 = arith.divf %18, %19 : vector<16x1xf32>
    %21 = vector.broadcast %13 : vector<16x1xf32> to vector<16x32xf32>
    %22 = arith.subf %0, %21 : vector<16x32xf32>
    %cst_8 = arith.constant 9.99999974E-6 : f32
    %23 = vector.broadcast %cst_8 : f32 to vector<16x1xf32>
    %24 = arith.addf %20, %23 : vector<16x1xf32>
    %25 = math.rsqrt %24 : vector<16x1xf32>
    %26 = vector.broadcast %25 : vector<16x1xf32> to vector<16x32xf32>
    %27 = arith.mulf %22, %26 : vector<16x32xf32>
    %28 = vector.broadcast %8 : vector<1x32xf32> to vector<16x32xf32>
    %29 = arith.mulf %27, %28 : vector<16x32xf32>
    %30 = vector.broadcast %9 : vector<1x32xf32> to vector<16x32xf32>
    %31 = arith.addf %29, %30 : vector<16x32xf32>
    %c0_9 = arith.constant 0 : index
    %c0_10 = arith.constant 0 : index
    %32 = vector.load %arg3[%c0_9, %c0_10] : memref<32x96xf32, #tpu.memory_space<vmem>>, vector<32x96xf32>
    %cst_11 = arith.constant dense<0.000000e+00> : vector<16x96xf32>
    %33 = tpu.matmul %31, %32, %cst_11 {dimension_numbers = #tpu.dot_dimension_numbers<[1], [0], [0], [1], [0, 0, 1, 1], [], []>} : vector<16x32xf32>, vector<32x96xf32>, vector<16x96xf32> -> vector<16x96xf32>
    %34 = vector.extract_strided_slice %33 {offsets = [0, 0], sizes = [16, 8], strides = [1, 1]} : vector<16x96xf32> to vector<16x8xf32>
    %35 = vector.extract_strided_slice %33 {offsets = [0, 32], sizes = [16, 8], strides = [1, 1]} : vector<16x96xf32> to vector<16x8xf32>
    %36 = vector.extract_strided_slice %33 {offsets = [0, 64], sizes = [16, 8], strides = [1, 1]} : vector<16x96xf32> to vector<16x8xf32>
    %37 = tpu.transpose %35, [1, 0] : vector<16x8xf32> -> vector<8x16xf32>
    %cst_12 = arith.constant dense<0.000000e+00> : vector<16x16xf32>
    %38 = tpu.matmul %34, %37, %cst_12 {dimension_numbers = #tpu.dot_dimension_numbers<[1], [0], [0], [1], [0, 0, 1, 1], [], []>} : vector<16x8xf32>, vector<8x16xf32>, vector<16x16xf32> -> vector<16x16xf32>
    %cst_13 = arith.constant 0xFF800000 : f32
    %39 = vector.broadcast %cst_13 : f32 to vector<16x16xf32>
    %40 = arith.select %7, %38, %39 : vector<16x16xi1>, vector<16x16xf32>
    %cst_14 = arith.constant dense<0xFF800000> : vector<16xf32>
    %41 = vector.multi_reduction <maximumf>, %40, %cst_14 [1] : vector<16x16xf32> to vector<16xf32>
    %42 = vector.shape_cast %41 : vector<16xf32> to vector<16x1xf32>
    %43 = vector.broadcast %42 : vector<16x1xf32> to vector<16x16xf32>
    %44 = arith.subf %40, %43 : vector<16x16xf32>
    %45 = math.exp %44 : vector<16x16xf32>
    %cst_15 = arith.constant dense<0.000000e+00> : vector<16xf32>
    %46 = vector.multi_reduction <add>, %45, %cst_15 [1] : vector<16x16xf32> to vector<16xf32>
    %47 = vector.shape_cast %46 : vector<16xf32> to vector<16x1xf32>
    %48 = tpu.reciprocal %47 : vector<16x1xf32> -> vector<16x1xf32>
    %49 = vector.broadcast %48 : vector<16x1xf32> to vector<16x16xf32>
    %50 = arith.mulf %45, %49 : vector<16x16xf32>
    %cst_16 = arith.constant dense<0.000000e+00> : vector<16x8xf32>
    %51 = tpu.matmul %50, %36, %cst_16 {dimension_numbers = #tpu.dot_dimension_numbers<[1], [0], [0], [1], [0, 0, 1, 1], [], []>} : vector<16x16xf32>, vector<16x8xf32>, vector<16x8xf32> -> vector<16x8xf32>
    %52 = vector.extract_strided_slice %33 {offsets = [0, 8], sizes = [16, 8], strides = [1, 1]} : vector<16x96xf32> to vector<16x8xf32>
    %53 = vector.extract_strided_slice %33 {offsets = [0, 40], sizes = [16, 8], strides = [1, 1]} : vector<16x96xf32> to vector<16x8xf32>
    %54 = vector.extract_strided_slice %33 {offsets = [0, 72], sizes = [16, 8], strides = [1, 1]} : vector<16x96xf32> to vector<16x8xf32>
    %55 = tpu.transpose %53, [1, 0] : vector<16x8xf32> -> vector<8x16xf32>
    %cst_17 = arith.constant dense<0.000000e+00> : vector<16x16xf32>
    %56 = tpu.matmul %52, %55, %cst_17 {dimension_numbers = #tpu.dot_dimension_numbers<[1], [0], [0], [1], [0, 0, 1, 1], [], []>} : vector<16x8xf32>, vector<8x16xf32>, vector<16x16xf32> -> vector<16x16xf32>
    %cst_18 = arith.constant 0xFF800000 : f32
    %57 = vector.broadcast %cst_18 : f32 to vector<16x16xf32>
    %58 = arith.select %7, %56, %57 : vector<16x16xi1>, vector<16x16xf32>
    %cst_19 = arith.constant dense<0xFF800000> : vector<16xf32>
    %59 = vector.multi_reduction <maximumf>, %58, %cst_19 [1] : vector<16x16xf32> to vector<16xf32>
    %60 = vector.shape_cast %59 : vector<16xf32> to vector<16x1xf32>
    %61 = vector.broadcast %60 : vector<16x1xf32> to vector<16x16xf32>
    %62 = arith.subf %58, %61 : vector<16x16xf32>
    %63 = math.exp %62 : vector<16x16xf32>
    %cst_20 = arith.constant dense<0.000000e+00> : vector<16xf32>
    %64 = vector.multi_reduction <add>, %63, %cst_20 [1] : vector<16x16xf32> to vector<16xf32>
    %65 = vector.shape_cast %64 : vector<16xf32> to vector<16x1xf32>
    %66 = tpu.reciprocal %65 : vector<16x1xf32> -> vector<16x1xf32>
    %67 = vector.broadcast %66 : vector<16x1xf32> to vector<16x16xf32>
    %68 = arith.mulf %63, %67 : vector<16x16xf32>
    %cst_21 = arith.constant dense<0.000000e+00> : vector<16x8xf32>
    %69 = tpu.matmul %68, %54, %cst_21 {dimension_numbers = #tpu.dot_dimension_numbers<[1], [0], [0], [1], [0, 0, 1, 1], [], []>} : vector<16x16xf32>, vector<16x8xf32>, vector<16x8xf32> -> vector<16x8xf32>
    %70 = vector.extract_strided_slice %33 {offsets = [0, 16], sizes = [16, 8], strides = [1, 1]} : vector<16x96xf32> to vector<16x8xf32>
    %71 = vector.extract_strided_slice %33 {offsets = [0, 48], sizes = [16, 8], strides = [1, 1]} : vector<16x96xf32> to vector<16x8xf32>
    %72 = vector.extract_strided_slice %33 {offsets = [0, 80], sizes = [16, 8], strides = [1, 1]} : vector<16x96xf32> to vector<16x8xf32>
    %73 = tpu.transpose %71, [1, 0] : vector<16x8xf32> -> vector<8x16xf32>
    %cst_22 = arith.constant dense<0.000000e+00> : vector<16x16xf32>
    %74 = tpu.matmul %70, %73, %cst_22 {dimension_numbers = #tpu.dot_dimension_numbers<[1], [0], [0], [1], [0, 0, 1, 1], [], []>} : vector<16x8xf32>, vector<8x16xf32>, vector<16x16xf32> -> vector<16x16xf32>
    %cst_23 = arith.constant 0xFF800000 : f32
    %75 = vector.broadcast %cst_23 : f32 to vector<16x16xf32>
    %76 = arith.select %7, %74, %75 : vector<16x16xi1>, vector<16x16xf32>
    %cst_24 = arith.constant dense<0xFF800000> : vector<16xf32>
    %77 = vector.multi_reduction <maximumf>, %76, %cst_24 [1] : vector<16x16xf32> to vector<16xf32>
    %78 = vector.shape_cast %77 : vector<16xf32> to vector<16x1xf32>
    %79 = vector.broadcast %78 : vector<16x1xf32> to vector<16x16xf32>
    %80 = arith.subf %76, %79 : vector<16x16xf32>
    %81 = math.exp %80 : vector<16x16xf32>
    %cst_25 = arith.constant dense<0.000000e+00> : vector<16xf32>
    %82 = vector.multi_reduction <add>, %81, %cst_25 [1] : vector<16x16xf32> to vector<16xf32>
    %83 = vector.shape_cast %82 : vector<16xf32> to vector<16x1xf32>
    %84 = tpu.reciprocal %83 : vector<16x1xf32> -> vector<16x1xf32>
    %85 = vector.broadcast %84 : vector<16x1xf32> to vector<16x16xf32>
    %86 = arith.mulf %81, %85 : vector<16x16xf32>
    %cst_26 = arith.constant dense<0.000000e+00> : vector<16x8xf32>
    %87 = tpu.matmul %86, %72, %cst_26 {dimension_numbers = #tpu.dot_dimension_numbers<[1], [0], [0], [1], [0, 0, 1, 1], [], []>} : vector<16x16xf32>, vector<16x8xf32>, vector<16x8xf32> -> vector<16x8xf32>
    %88 = vector.extract_strided_slice %33 {offsets = [0, 24], sizes = [16, 8], strides = [1, 1]} : vector<16x96xf32> to vector<16x8xf32>
    %89 = vector.extract_strided_slice %33 {offsets = [0, 56], sizes = [16, 8], strides = [1, 1]} : vector<16x96xf32> to vector<16x8xf32>
    %90 = vector.extract_strided_slice %33 {offsets = [0, 88], sizes = [16, 8], strides = [1, 1]} : vector<16x96xf32> to vector<16x8xf32>
    %91 = tpu.transpose %89, [1, 0] : vector<16x8xf32> -> vector<8x16xf32>
    %cst_27 = arith.constant dense<0.000000e+00> : vector<16x16xf32>
    %92 = tpu.matmul %88, %91, %cst_27 {dimension_numbers = #tpu.dot_dimension_numbers<[1], [0], [0], [1], [0, 0, 1, 1], [], []>} : vector<16x8xf32>, vector<8x16xf32>, vector<16x16xf32> -> vector<16x16xf32>
    %cst_28 = arith.constant 0xFF800000 : f32
    %93 = vector.broadcast %cst_28 : f32 to vector<16x16xf32>
    %94 = arith.select %7, %92, %93 : vector<16x16xi1>, vector<16x16xf32>
    %cst_29 = arith.constant dense<0xFF800000> : vector<16xf32>
    %95 = vector.multi_reduction <maximumf>, %94, %cst_29 [1] : vector<16x16xf32> to vector<16xf32>
    %96 = vector.shape_cast %95 : vector<16xf32> to vector<16x1xf32>
    %97 = vector.broadcast %96 : vector<16x1xf32> to vector<16x16xf32>
    %98 = arith.subf %94, %97 : vector<16x16xf32>
    %99 = math.exp %98 : vector<16x16xf32>
    %cst_30 = arith.constant dense<0.000000e+00> : vector<16xf32>
    %100 = vector.multi_reduction <add>, %99, %cst_30 [1] : vector<16x16xf32> to vector<16xf32>
    %101 = vector.shape_cast %100 : vector<16xf32> to vector<16x1xf32>
    %102 = tpu.reciprocal %101 : vector<16x1xf32> -> vector<16x1xf32>
    %103 = vector.broadcast %102 : vector<16x1xf32> to vector<16x16xf32>
    %104 = arith.mulf %99, %103 : vector<16x16xf32>
    %cst_31 = arith.constant dense<0.000000e+00> : vector<16x8xf32>
    %105 = tpu.matmul %104, %90, %cst_31 {dimension_numbers = #tpu.dot_dimension_numbers<[1], [0], [0], [1], [0, 0, 1, 1], [], []>} : vector<16x16xf32>, vector<16x8xf32>, vector<16x8xf32> -> vector<16x8xf32>
    %106 = tpu.concatenate %51, %69, %87, %105 in 1 : vector<16x8xf32>, vector<16x8xf32>, vector<16x8xf32>, vector<16x8xf32> -> vector<16x32xf32>
    %c0_32 = arith.constant 0 : index
    %c0_33 = arith.constant 0 : index
    %107 = vector.load %arg4[%c0_32, %c0_33] : memref<32x32xf32, #tpu.memory_space<vmem>>, vector<32x32xf32>
    %cst_34 = arith.constant dense<0.000000e+00> : vector<16x32xf32>
    %108 = tpu.matmul %106, %107, %cst_34 {dimension_numbers = #tpu.dot_dimension_numbers<[1], [0], [0], [1], [0, 0, 1, 1], [], []>} : vector<16x32xf32>, vector<32x32xf32>, vector<16x32xf32> -> vector<16x32xf32>
    %109 = arith.addf %0, %108 : vector<16x32xf32>
    %c0_35 = arith.constant 0 : index
    %c0_36 = arith.constant 0 : index
    %110 = vector.load %arg5[%c0_35, %c0_36] : memref<1x32xf32, #tpu.memory_space<vmem>>, vector<1x32xf32>
    %111 = vector.broadcast %110 : vector<1x32xf32> to vector<16x32xf32>
    %112 = arith.addf %109, %111 : vector<16x32xf32>
    %c0_37 = arith.constant 0 : index
    %c0_38 = arith.constant 0 : index
    %113 = vector.load %arg6[%c0_37, %c0_38] : memref<1x32xf32, #tpu.memory_space<vmem>>, vector<1x32xf32>
    %c0_39 = arith.constant 0 : index
    %c0_40 = arith.constant 0 : index
    %114 = vector.load %arg7[%c0_39, %c0_40] : memref<1x32xf32, #tpu.memory_space<vmem>>, vector<1x32xf32>
    %cst_41 = arith.constant dense<0.000000e+00> : vector<16xf32>
    %115 = vector.multi_reduction <add>, %112, %cst_41 [1] : vector<16x32xf32> to vector<16xf32>
    %116 = vector.shape_cast %115 : vector<16xf32> to vector<16x1xf32>
    %cst_42 = arith.constant 3.200000e+01 : f32
    %117 = vector.broadcast %cst_42 : f32 to vector<16x1xf32>
    %118 = arith.divf %116, %117 : vector<16x1xf32>
    %119 = vector.broadcast %118 : vector<16x1xf32> to vector<16x32xf32>
    %120 = arith.subf %112, %119 : vector<16x32xf32>
    %121 = arith.mulf %120, %120 : vector<16x32xf32>
    %cst_43 = arith.constant dense<0.000000e+00> : vector<16xf32>
    %122 = vector.multi_reduction <add>, %121, %cst_43 [1] : vector<16x32xf32> to vector<16xf32>
    %123 = vector.shape_cast %122 : vector<16xf32> to vector<16x1xf32>
    %cst_44 = arith.constant 3.200000e+01 : f32
    %124 = vector.broadcast %cst_44 : f32 to vector<16x1xf32>
    %125 = arith.divf %123, %124 : vector<16x1xf32>
    %126 = vector.broadcast %118 : vector<16x1xf32> to vector<16x32xf32>
    %127 = arith.subf %112, %126 : vector<16x32xf32>
    %cst_45 = arith.constant 9.99999974E-6 : f32
    %128 = vector.broadcast %cst_45 : f32 to vector<16x1xf32>
    %129 = arith.addf %125, %128 : vector<16x1xf32>
    %130 = math.rsqrt %129 : vector<16x1xf32>
    %131 = vector.broadcast %130 : vector<16x1xf32> to vector<16x32xf32>
    %132 = arith.mulf %127, %131 : vector<16x32xf32>
    %133 = vector.broadcast %113 : vector<1x32xf32> to vector<16x32xf32>
    %134 = arith.mulf %132, %133 : vector<16x32xf32>
    %135 = vector.broadcast %114 : vector<1x32xf32> to vector<16x32xf32>
    %136 = arith.addf %134, %135 : vector<16x32xf32>
    %c0_46 = arith.constant 0 : index
    %c0_47 = arith.constant 0 : index
    %137 = vector.load %arg8[%c0_46, %c0_47] : memref<32x128xf32, #tpu.memory_space<vmem>>, vector<32x128xf32>
    %cst_48 = arith.constant dense<0.000000e+00> : vector<16x128xf32>
    %138 = tpu.matmul %136, %137, %cst_48 {dimension_numbers = #tpu.dot_dimension_numbers<[1], [0], [0], [1], [0, 0, 1, 1], [], []>} : vector<16x32xf32>, vector<32x128xf32>, vector<16x128xf32> -> vector<16x128xf32>
    %c0_49 = arith.constant 0 : index
    %c0_50 = arith.constant 0 : index
    %139 = vector.load %arg9[%c0_49, %c0_50] : memref<1x128xf32, #tpu.memory_space<vmem>>, vector<1x128xf32>
    %140 = vector.broadcast %139 : vector<1x128xf32> to vector<16x128xf32>
    %141 = arith.addf %138, %140 : vector<16x128xf32>
    %cst_51 = arith.constant 0.000000e+00 : f32
    %142 = vector.broadcast %cst_51 : f32 to vector<16x128xf32>
    %143 = arith.maximumf %141, %142 : vector<16x128xf32>
    %c0_52 = arith.constant 0 : index
    %c0_53 = arith.constant 0 : index
    %144 = vector.load %arg10[%c0_52, %c0_53] : memref<128x32xf32, #tpu.memory_space<vmem>>, vector<128x32xf32>
    %cst_54 = arith.constant dense<0.000000e+00> : vector<16x32xf32>
    %145 = tpu.matmul %143, %144, %cst_54 {dimension_numbers = #tpu.dot_dimension_numbers<[1], [0], [0], [1], [0, 0, 1, 1], [], []>} : vector<16x128xf32>, vector<128x32xf32>, vector<16x32xf32> -> vector<16x32xf32>
    %c0_55 = arith.constant 0 : index
    %c0_56 = arith.constant 0 : index
    %146 = vector.load %arg11[%c0_55, %c0_56] : memref<1x32xf32, #tpu.memory_space<vmem>>, vector<1x32xf32>
    %147 = vector.broadcast %146 : vector<1x32xf32> to vector<16x32xf32>
    %148 = arith.addf %145, %147 : vector<16x32xf32>
    %149 = arith.addf %112, %148 : vector<16x32xf32>
    %c0_57 = arith.constant 0 : index
    %c0_58 = arith.constant 0 : index
    %150 = vector.load %arg12[%c0_57, %c0_58] : memref<16x32xf32, #tpu.memory_space<vmem>>, vector<16x32xf32>
    tpu.vector_store %arg12[%c0_57, %c0_58], %149 {strides = array<i32>} : memref<16x32xf32, #tpu.memory_space<vmem>>, vector<16x32xf32>,
    return
  }
}

</mosaic_0001>

<llo_original>
// kernel: tpu_custom_call.1
$region0: #{tpu_custom_call.1}
  #allocation0 [shape = 'u32[]', space=smem, size = 0x4, offset = 0x4, fixed_abs, tag = 'smem constant byte address 0x4 - core index']
  #allocation1 [shape = 'u32[144,128]{1,0:T(1,128)}', space=vmem, size = 0x12000, scoped, tag = 'internal scratch']
  %s0 = inlined_call_operand.vmem [shape: f32[16,32], index: 0, kind: input, shape index: {}]
  %s1 = inlined_call_operand.vmem [shape: f32[1,32], index: 1, kind: input, shape index: {}]
  %s2 = inlined_call_operand.vmem [shape: f32[1,32], index: 2, kind: input, shape index: {}]
  %s3 = inlined_call_operand.vmem [shape: f32[32,96], index: 3, kind: input, shape index: {}]
  %s4 = inlined_call_operand.vmem [shape: f32[32,32], index: 4, kind: input, shape index: {}]
  %s5 = inlined_call_operand.vmem [shape: f32[1,32], index: 5, kind: input, shape index: {}]
  %s6 = inlined_call_operand.vmem [shape: f32[1,32], index: 6, kind: input, shape index: {}]
  %s7 = inlined_call_operand.vmem [shape: f32[1,32], index: 7, kind: input, shape index: {}]
  %s8 = inlined_call_operand.vmem [shape: f32[32,128], index: 8, kind: input, shape index: {}]
  %s9 = inlined_call_operand.vmem [shape: f32[1,128], index: 9, kind: input, shape index: {}]
  %s10 = inlined_call_operand.vmem [shape: f32[128,32], index: 10, kind: input, shape index: {}]
  %s11 = inlined_call_operand.vmem [shape: f32[1,32], index: 11, kind: input, shape index: {}]
  %s12 = inlined_call_operand.hbm [shape: f32[16,32], index: 12, kind: output, shape index: {}]
  %s13 = sld [smem:[#allocation0]]
  $region58: #{tpu_custom_call.1} parent=0
    _
  %s15 = ssub.s32 1, %s13
  %s16 = scalar_select 0, %s15, %s13
  $region1: #{tpu_custom_call.1} parent=0
    #allocation2 [shape = 'u8[8192]{0}', space=vmem, size = 0x2000, scoped, tag = 'output window, operand 0, single buffered']
    #allocation3 [shape = 's32[1]{0}', space=sflag, size = 0x4, scoped, tag = 'scoped memory for tpu_custom_call.1']
    %17 = vsyncpa [#allocation3], 0
    // Predicated region
    $region2: #{tpu_custom_call.1} parent=1 // pred_check
      _
    $region3: #{tpu_custom_call.1} parent=1 // pred_check_branch
      %19 = sbr.rel (0) target = $region5
    $region4: #{tpu_custom_call.1} parent=1 // pred_region
      _
    $region5: #{tpu_custom_call.1} parent=1 // pred_fallthru
      _
    // Predicated region
    $region6: #{tpu_custom_call.1} parent=1 // pred_check
      _
    $region7: #{tpu_custom_call.1} parent=1 // pred_check_branch
      %21 = sbr.rel (0) target = $region9
    $region8: #{tpu_custom_call.1} parent=1 // pred_region
      _
    $region9: #{tpu_custom_call.1} parent=1 // pred_fallthru
      _
    // Predicated region
    $region10: #{tpu_custom_call.1} parent=1 // pred_check
      _
    $region11: #{tpu_custom_call.1} parent=1 // pred_check_branch
      %23 = sbr.rel (0) target = $region13
    $region12: #{tpu_custom_call.1} parent=1 // pred_region
      _
    $region13: #{tpu_custom_call.1} parent=1 // pred_fallthru
      _
    // Predicated region
    $region14: #{tpu_custom_call.1} parent=1 // pred_check
      _
    $region15: #{tpu_custom_call.1} parent=1 // pred_check_branch
      %25 = sbr.rel (0) target = $region17
    $region16: #{tpu_custom_call.1} parent=1 // pred_region
      _
    $region17: #{tpu_custom_call.1} parent=1 // pred_fallthru
      _
    // Predicated region
    $region18: #{tpu_custom_call.1} parent=1 // pred_check
      _
    $region19: #{tpu_custom_call.1} parent=1 // pred_check_branch
      %27 = sbr.rel (0) target = $region21
    $region20: #{tpu_custom_call.1} parent=1 // pred_region
      _
    $region21: #{tpu_custom_call.1} parent=1 // pred_fallthru
      _
    // Predicated region
    $region22: #{tpu_custom_call.1} parent=1 // pred_check
      _
    $region23: #{tpu_custom_call.1} parent=1 // pred_check_branch
      %29 = sbr.rel (0) target = $region25
    $region24: #{tpu_custom_call.1} parent=1 // pred_region
      _
    $region25: #{tpu_custom_call.1} parent=1 // pred_fallthru
      _
    // Predicated region
    $region26: #{tpu_custom_call.1} parent=1 // pred_check
      _
    $region27: #{tpu_custom_call.1} parent=1 // pred_check_branch
      %31 = sbr.rel (0) target = $region29
    $region28: #{tpu_custom_call.1} parent=1 // pred_region
      _
    $region29: #{tpu_custom_call.1} parent=1 // pred_fallthru
      _
    // Predicated region
    $region30: #{tpu_custom_call.1} parent=1 // pred_check
      _
    $region31: #{tpu_custom_call.1} parent=1 // pred_check_branch
      %33 = sbr.rel (0) target = $region33
    $region32: #{tpu_custom_call.1} parent=1 // pred_region
      _
    $region33: #{tpu_custom_call.1} parent=1 // pred_fallthru
      _
    // Predicated region
    $region34: #{tpu_custom_call.1} parent=1 // pred_check
      _
    $region35: #{tpu_custom_call.1} parent=1 // pred_check_branch
      %35 = sbr.rel (0) target = $region37
    $region36: #{tpu_custom_call.1} parent=1 // pred_region
      _
    $region37: #{tpu_custom_call.1} parent=1 // pred_fallthru
      _
    // Predicated region
    $region38: #{tpu_custom_call.1} parent=1 // pred_check
      _
    $region39: #{tpu_custom_call.1} parent=1 // pred_check_branch
      %37 = sbr.rel (0) target = $region41
    $region40: #{tpu_custom_call.1} parent=1 // pred_region
      _
    $region41: #{tpu_custom_call.1} parent=1 // pred_fallthru
      _
    // Predicated region
    $region42: #{tpu_custom_call.1} parent=1 // pred_check
      _
    $region43: #{tpu_custom_call.1} parent=1 // pred_check_branch
      %39 = sbr.rel (0) target = $region45
    $region44: #{tpu_custom_call.1} parent=1 // pred_region
      _
    $region45: #{tpu_custom_call.1} parent=1 // pred_fallthru
      _
    // Predicated region
    $region46: #{tpu_custom_call.1} parent=1 // pred_check
      _
    $region47: #{tpu_custom_call.1} parent=1 // pred_check_branch
      %41 = sbr.rel (0) target = $region49
    $region48: #{tpu_custom_call.1} parent=1 // pred_region
      _
    $region49: #{tpu_custom_call.1} parent=1 // pred_fallthru
      _
    %v42 = vld [vmem:[%s0] sm:$0xff]
    %v43 = vld [vmem:[%s0 + $0x8] sm:$0xff]
    %v44 = vlaneseq
    %v45 = vshrl.u32 %v44, 7
    %v46 = vadd.s32 %v45, 8
    %v47 = vlaneseq
    %v48 = vand.u32 %v47, 127
    %vm49 = vcmp.ge.s32.totalorder %v45, %v48
    %vm50 = vcmp.ge.s32.totalorder %v46, %v48
    %v51 = vxor.u32 %v45, %v48
    %v52 = vxor.u32 %v46, %v48
    %vm53 = vcmp.lt.s32.totalorder %v51, 8
    %vm54 = vcmp.lt.s32.totalorder %v52, 8
    %vm55 = vmand %vm49, %vm53
    %vm56 = vmand %vm50, %vm54
    %v57 = vld [vmem:[%s1] sm:$0x1]
    %v58 = vld [vmem:[%s2] sm:$0x1]
    %vm59 = vcmask 261120
    %v60 = vsel %vm59, %v42, 0.0
    %61 = vadd.xlane.f32.xlu0 %v60
    %v62 = vpop.xlane.xlu0 %61
    %v63 = vsel %vm59, %v43, 0.0
    %64 = vadd.xlane.f32.xlu0 %v63
    %v65 = vpop.xlane.xlu0 %64
    %v66 = vrcp.pop 32.0
    %v67 = vmul.f32 %v62, %v66
    %v68 = vmul.f32 %v65, %v66
    %v69 = vsub.f32 %v42, %v67
    %v70 = vsub.f32 %v43, %v68
    %v71 = vmul.f32 %v69, %v69
    %v72 = vmul.f32 %v70, %v70
    %v73 = vsel %vm59, %v71, 0.0
    %74 = vadd.xlane.f32.xlu0 %v73
    %v75 = vpop.xlane.xlu0 %74
    %v76 = vsel %vm59, %v72, 0.0
    %77 = vadd.xlane.f32.xlu0 %v76
    %v78 = vpop.xlane.xlu0 %77
    %v79 = vmul.f32 %v75, %v66
    %v80 = vmul.f32 %v78, %v66
    %v81 = vadd.f32 %v79, 1e-05
    %v82 = vadd.f32 %v80, 1e-05
    %v83 = vrsqrt.pop %v81
    %v84 = vrsqrt.pop %v82
    %v85 = vmul.f32 %v69, %v83
    %v86 = vmul.f32 %v70, %v84
    %v88 = vlaneseq
    %v89 = vshrl.u32 %v88, 7
    %v90 = vsub.s32 0, %v89
    %v91 = vrot.slane %v57, %v90
    %v93 = vmul.f32 %v85, %v91
    %v94 = vmul.f32 %v86, %v91
    %v96 = vlaneseq
    %v97 = vshrl.u32 %v96, 7
    %v98 = vsub.s32 0, %v97
    %v99 = vrot.slane %v58, %v98
    %v101 = vadd.f32 %v93, %v99
    %v102 = vadd.f32 %v94, %v99
    %v103 = vld [vmem:[%s3] sm:$0xff]
    %v104 = vld [vmem:[%s3 + $0x8] sm:$0xff]
    %v105 = vld [vmem:[%s3 + $0x10] sm:$0xff]
    %v106 = vld [vmem:[%s3 + $0x18] sm:$0xff]
    %v108 = vsel %vm59, %v101, 0
    %v111 = vsel %vm59, %v102, 0
    %113 = vmatprep.subr.mxu0 0.0
    %114 = vmatpush1.msra.mxu0 %v103
    %115 = vmatprep.subr.mxu0 0.0
    %116 = vmatpush1.msra.mxu0 %v104
    %117 = vmatprep.subr.mxu0 0.0
    %118 = vmatpush1.msra.mxu0 %v105
    %119 = vmatprep.subr.mxu0 0.0
    %120 = vmatpush1.msra.mxu0 %v106
    %121 = vmatprep.subr.mxu0 0.0
    %122 = vmatpush1.msra.mxu0 0.0
    %123 = vmatprep.subr.mxu0 0.0
    %124 = vmatpush1.msra.mxu0 0.0
    %125 = vmatprep.subr.mxu0 0.0
    %126 = vmatpush1.msra.mxu0 0.0
    %127 = vmatprep.subr.mxu0 0.0
    %128 = vmatpush1.msra.mxu0 0.0
    %129 = vmatprep.subr.mxu0 0.0
    %130 = vmatpush1.msra.mxu0 0.0
    %131 = vmatprep.subr.mxu0 0.0
    %132 = vmatpush1.msra.mxu0 0.0
    %133 = vmatprep.subr.mxu0 0.0
    %134 = vmatpush1.msra.mxu0 0.0
    %135 = vmatprep.subr.mxu0 0.0
    %136 = vmatpush1.msra.mxu0 0.0
    %137 = vmatprep.subr.mxu0 0.0
    %138 = vmatpush1.msra.mxu0 0.0
    %139 = vmatprep.subr.mxu0 0.0
    %140 = vmatpush1.msra.mxu0 0.0
    %141 = vmatprep.subr.mxu0 0.0
    %142 = vmatpush1.msra.mxu0 0.0
    %143 = vmatprep.subr.mxu0 0.0
    %144 = vmatpush1.msra.mxu0 0.0
    %145 = vmatprep.subr.mxu0 0.0
    %146 = vmatpush1.msra.mxu0 0.0
    %147 = vmatprep.subr.mxu0 0.0
    %148 = vmatpush1.msra.mxu0 0.0
    %149 = vmatprep.subr.mxu0 0.0
    %150 = vmatpush1.msra.mxu0 0.0
    %151 = vmatprep.subr.mxu0 0.0
    %152 = vmatpush1.msra.mxu0 0.0
    %153 = vmatprep.subr.mxu0 0.0
    %154 = vmatpush1.msra.mxu0 0.0
    %155 = vmatprep.subr.mxu0 0.0
    %156 = vmatpush1.msra.mxu0 0.0
    %157 = vmatprep.subr.mxu0 0.0
    %158 = vmatpush1.msra.mxu0 0.0
    %159 = vmatprep.subr.mxu0 0.0
    %160 = vmatpush1.msra.mxu0 0.0
    %161 = vmatprep.subr.mxu0 0.0
    %162 = vmatpush1.msra.mxu0 0.0
    %163 = vmatprep.subr.mxu0 0.0
    %164 = vmatpush1.msra.mxu0 0.0
    %165 = vmatprep.subr.mxu0 0.0
    %166 = vmatpush1.msra.mxu0 0.0
    %167 = vmatprep.subr.mxu0 0.0
    %168 = vmatpush1.msra.mxu0 0.0
    %169 = vmatprep.subr.mxu0 0.0
    %170 = vmatpush1.msra.mxu0 0.0
    %171 = vmatprep.subr.mxu0 0.0
    %172 = vmatpush1.msra.mxu0 0.0
    %173 = vmatprep.subr.mxu0 0.0
    %174 = vmatpush1.msra.mxu0 0.0
    %175 = vmatprep.subr.mxu0 0.0
    %176 = vmatpush1.msra.mxu0 0.0
    %177 = vmatprep.mubr.f32.mxu0 0.0
    %178 = vmatmul.mubr.f32.gmra.mrb[0].mxu0 %v108
    %v179 = vpop.f32.mrb[0].mxu0
    %v180 = vadd.f32 0.0, %v179
    %v181 = vpop.f32.mrb[0].mxu0
    %182 = vmatprep.mubr.f32.mxu0 0.0
    %183 = vmatmul.mubr.f32.gmra.mrb[0].mxu0 %v111
    %v184 = vpop.f32.mrb[0].mxu0
    %v185 = vadd.f32 0.0, %v184
    %v186 = vpop.f32.mrb[0].mxu0
    %187 = vdwg.mxu0
    %190 = vrot.lane.b32.xlu0 %v180, 96
    %v191 = vpop.permute.xlu0 %190
    %192 = vrot.lane.b32.xlu0 %v185, 96
    %v193 = vpop.permute.xlu0 %192
    %vm194 = vcmask 64512
    %v195 = vsel %vm194, %v180, 0
    %v197 = vsel %vm194, %v185, 0
    %v199 = vsel %vm194, %v191, 0
    %v201 = vsel %vm194, %v193, 0
    %203 = vmatprep.subr.mxu0 0.0
    %204 = vmatpush1.xpose.msra.mxu0 %v199
    %205 = vmatprep.subr.mxu0 0.0
    %206 = vmatpush1.xpose.msra.mxu0 %v201
    %207 = vmatprep.subr.mxu0 0.0
    %208 = vmatpush1.xpose.msra.mxu0 0.0
    %209 = vmatprep.subr.mxu0 0.0
    %210 = vmatpush1.xpose.msra.mxu0 0.0
    %211 = vmatprep.subr.mxu0 0.0
    %212 = vmatpush1.xpose.msra.mxu0 0.0
    %213 = vmatprep.subr.mxu0 0.0
    %214 = vmatpush1.xpose.msra.mxu0 0.0
    %215 = vmatprep.subr.mxu0 0.0
    %216 = vmatpush1.xpose.msra.mxu0 0.0
    %217 = vmatprep.subr.mxu0 0.0
    %218 = vmatpush1.xpose.msra.mxu0 0.0
    %219 = vmatprep.subr.mxu0 0.0
    %220 = vmatpush1.xpose.msra.mxu0 0.0
    %221 = vmatprep.subr.mxu0 0.0
    %222 = vmatpush1.xpose.msra.mxu0 0.0
    %223 = vmatprep.subr.mxu0 0.0
    %224 = vmatpush1.xpose.msra.mxu0 0.0
    %225 = vmatprep.subr.mxu0 0.0
    %226 = vmatpush1.xpose.msra.mxu0 0.0
    %227 = vmatprep.subr.mxu0 0.0
    %228 = vmatpush1.xpose.msra.mxu0 0.0
    %229 = vmatprep.subr.mxu0 0.0
    %230 = vmatpush1.xpose.msra.mxu0 0.0
    %231 = vmatprep.subr.mxu0 0.0
    %232 = vmatpush1.xpose.msra.mxu0 0.0
    %233 = vmatprep.subr.mxu0 0.0
    %234 = vmatpush1.xpose.msra.mxu0 0.0
    %235 = vmatprep.subr.mxu0 0.0
    %236 = vmatpush1.xpose.msra.mxu0 0.0
    %237 = vmatprep.subr.mxu0 0.0
    %238 = vmatpush1.xpose.msra.mxu0 0.0
    %239 = vmatprep.subr.mxu0 0.0
    %240 = vmatpush1.xpose.msra.mxu0 0.0
    %241 = vmatprep.subr.mxu0 0.0
    %242 = vmatpush1.xpose.msra.mxu0 0.0
    %243 = vmatprep.subr.mxu0 0.0
    %244 = vmatpush1.xpose.msra.mxu0 0.0
    %245 = vmatprep.subr.mxu0 0.0
    %246 = vmatpush1.xpose.msra.mxu0 0.0
    %247 = vmatprep.subr.mxu0 0.0
    %248 = vmatpush1.xpose.msra.mxu0 0.0
    %249 = vmatprep.subr.mxu0 0.0
    %250 = vmatpush1.xpose.msra.mxu0 0.0
    %251 = vmatprep.subr.mxu0 0.0
    %252 = vmatpush1.xpose.msra.mxu0 0.0
    %253 = vmatprep.subr.mxu0 0.0
    %254 = vmatpush1.xpose.msra.mxu0 0.0
    %255 = vmatprep.subr.mxu0 0.0
    %256 = vmatpush1.xpose.msra.mxu0 0.0
    %257 = vmatprep.subr.mxu0 0.0
    %258 = vmatpush1.xpose.msra.mxu0 0.0
    %259 = vmatprep.subr.mxu0 0.0
    %260 = vmatpush1.xpose.msra.mxu0 0.0
    %261 = vmatprep.subr.mxu0 0.0
    %262 = vmatpush1.xpose.msra.mxu0 0.0
    %263 = vmatprep.subr.mxu0 0.0
    %264 = vmatpush1.xpose.msra.mxu0 0.0
    %265 = vmatprep.subr.mxu0 0.0
    %266 = vmatpush1.xpose.msra.mxu0 0.0
    %267 = vmatprep.mubr.f32.mxu0 0.0
    %268 = vmatmul.mubr.f32.gmra.mrb[0].mxu0 %v195
    %v269 = vpop.f32.mrb[0].mxu0
    %v270 = vadd.f32 0.0, %v269
    %v271 = vpop.f32.mrb[0].mxu0
    %272 = vmatprep.mubr.f32.mxu0 0.0
    %273 = vmatmul.mubr.f32.gmra.mrb[0].mxu0 %v197
    %v274 = vpop.f32.mrb[0].mxu0
    %v275 = vadd.f32 0.0, %v274
    %v276 = vpop.f32.mrb[0].mxu0
    %277 = vdwg.mxu0
    %v278 = vsel %vm55, %v270, -inf
    %v279 = vsel %vm56, %v275, -inf
    %vm280 = vcmask 130048
    %v281 = vsel %vm280, %v278, -inf
    %282 = vmax.xlane.f32.xlu0 %v281
    %v283 = vpop.xlane.xlu0 %282
    %v284 = vsel %vm280, %v279, -inf
    %285 = vmax.xlane.f32.xlu0 %v284
    %v286 = vpop.xlane.xlu0 %285
    %v287 = vsub.f32 %v278, %v283
    %v288 = vsub.f32 %v279, %v286
    %v289 = vmul.f32 %v287, 1.442695
    %v290 = vpow.pop %v289
    %v291 = vmul.f32 %v288, 1.442695
    %v292 = vpow.pop %v291
    %v293 = vsel %vm280, %v290, 0.0
    %294 = vadd.xlane.f32.xlu0 %v293
    %v295 = vpop.xlane.xlu0 %294
    %v296 = vsel %vm280, %v292, 0.0
    %297 = vadd.xlane.f32.xlu0 %v296
    %v298 = vpop.xlane.xlu0 %297
    %v299 = vrcp.pop %v295
    %v300 = vrcp.pop %v298
    %v301 = vmul.f32 %v290, %v299
    %v302 = vmul.f32 %v292, %v300
    %303 = vrot.lane.b32.xlu0 %v180, 64
    %v304 = vpop.permute.xlu0 %303
    %305 = vrot.lane.b32.xlu0 %v185, 64
    %v306 = vpop.permute.xlu0 %305
    %v310 = vsel %vm280, %v301, 0
    %v313 = vsel %vm280, %v302, 0
    %315 = vmatprep.subr.mxu0 0.0
    %316 = vmatpush1.msra.mxu0 %v304
    %317 = vmatprep.subr.mxu0 0.0
    %318 = vmatpush1.msra.mxu0 %v306
    %319 = vmatprep.subr.mxu0 0.0
    %320 = vmatpush1.msra.mxu0 0.0
    %321 = vmatprep.subr.mxu0 0.0
    %322 = vmatpush1.msra.mxu0 0.0
    %323 = vmatprep.subr.mxu0 0.0
    %324 = vmatpush1.msra.mxu0 0.0
    %325 = vmatprep.subr.mxu0 0.0
    %326 = vmatpush1.msra.mxu0 0.0
    %327 = vmatprep.subr.mxu0 0.0
    %328 = vmatpush1.msra.mxu0 0.0
    %329 = vmatprep.subr.mxu0 0.0
    %330 = vmatpush1.msra.mxu0 0.0
    %331 = vmatprep.subr.mxu0 0.0
    %332 = vmatpush1.msra.mxu0 0.0
    %333 = vmatprep.subr.mxu0 0.0
    %334 = vmatpush1.msra.mxu0 0.0
    %335 = vmatprep.subr.mxu0 0.0
    %336 = vmatpush1.msra.mxu0 0.0
    %337 = vmatprep.subr.mxu0 0.0
    %338 = vmatpush1.msra.mxu0 0.0
    %339 = vmatprep.subr.mxu0 0.0
    %340 = vmatpush1.msra.mxu0 0.0
    %341 = vmatprep.subr.mxu0 0.0
    %342 = vmatpush1.msra.mxu0 0.0
    %343 = vmatprep.subr.mxu0 0.0
    %344 = vmatpush1.msra.mxu0 0.0
    %345 = vmatprep.subr.mxu0 0.0
    %346 = vmatpush1.msra.mxu0 0.0
    %347 = vmatprep.subr.mxu0 0.0
    %348 = vmatpush1.msra.mxu0 0.0
    %349 = vmatprep.subr.mxu0 0.0
    %350 = vmatpush1.msra.mxu0 0.0
    %351 = vmatprep.subr.mxu0 0.0
    %352 = vmatpush1.msra.mxu0 0.0
    %353 = vmatprep.subr.mxu0 0.0
    %354 = vmatpush1.msra.mxu0 0.0
    %355 = vmatprep.subr.mxu0 0.0
    %356 = vmatpush1.msra.mxu0 0.0
    %357 = vmatprep.subr.mxu0 0.0
    %358 = vmatpush1.msra.mxu0 0.0
    %359 = vmatprep.subr.mxu0 0.0
    %360 = vmatpush1.msra.mxu0 0.0
    %361 = vmatprep.subr.mxu0 0.0
    %362 = vmatpush1.msra.mxu0 0.0
    %363 = vmatprep.subr.mxu0 0.0
    %364 = vmatpush1.msra.mxu0 0.0
    %365 = vmatprep.subr.mxu0 0.0
    %366 = vmatpush1.msra.mxu0 0.0
    %367 = vmatprep.subr.mxu0 0.0
    %368 = vmatpush1.msra.mxu0 0.0
    %369 = vmatprep.subr.mxu0 0.0
    %370 = vmatpush1.msra.mxu0 0.0
    %371 = vmatprep.subr.mxu0 0.0
    %372 = vmatpush1.msra.mxu0 0.0
    %373 = vmatprep.subr.mxu0 0.0
    %374 = vmatpush1.msra.mxu0 0.0
    %375 = vmatprep.subr.mxu0 0.0
    %376 = vmatpush1.msra.mxu0 0.0
    %377 = vmatprep.subr.mxu0 0.0
    %378 = vmatpush1.msra.mxu0 0.0
    %379 = vmatprep.mubr.f32.mxu0 0.0
    %380 = vmatmul.mubr.f32.gmra.mrb[0].mxu0 %v310
    %v381 = vpop.f32.mrb[0].mxu0
    %v382 = vadd.f32 0.0, %v381
    %v383 = vpop.f32.mrb[0].mxu0
    %384 = vmatprep.mubr.f32.mxu0 0.0
    %385 = vmatmul.mubr.f32.gmra.mrb[0].mxu0 %v313
    %v386 = vpop.f32.mrb[0].mxu0
    %v387 = vadd.f32 0.0, %v386
    %v388 = vpop.f32.mrb[0].mxu0
    %389 = vdwg.mxu0
    %390 = vrot.lane.b32.xlu0 %v180, 120
    %v391 = vpop.permute.xlu0 %390
    %392 = vrot.lane.b32.xlu0 %v185, 120
    %v393 = vpop.permute.xlu0 %392
    %394 = vrot.lane.b32.xlu0 %v180, 88
    %v395 = vpop.permute.xlu0 %394
    %396 = vrot.lane.b32.xlu0 %v185, 88
    %v397 = vpop.permute.xlu0 %396
    %v398 = vsel %vm194, %v391, 0
    %v400 = vsel %vm194, %v393, 0
    %v402 = vsel %vm194, %v395, 0
    %v404 = vsel %vm194, %v397, 0
    %406 = vmatprep.subr.mxu0 0.0
    %407 = vmatpush1.xpose.msra.mxu0 %v402
    %408 = vmatprep.subr.mxu0 0.0
    %409 = vmatpush1.xpose.msra.mxu0 %v404
    %410 = vmatprep.subr.mxu0 0.0
    %411 = vmatpush1.xpose.msra.mxu0 0.0
    %412 = vmatprep.subr.mxu0 0.0
    %413 = vmatpush1.xpose.msra.mxu0 0.0
    %414 = vmatprep.subr.mxu0 0.0
    %415 = vmatpush1.xpose.msra.mxu0 0.0
    %416 = vmatprep.subr.mxu0 0.0
    %417 = vmatpush1.xpose.msra.mxu0 0.0
    %418 = vmatprep.subr.mxu0 0.0
    %419 = vmatpush1.xpose.msra.mxu0 0.0
    %420 = vmatprep.subr.mxu0 0.0
    %421 = vmatpush1.xpose.msra.mxu0 0.0
    %422 = vmatprep.subr.mxu0 0.0
    %423 = vmatpush1.xpose.msra.mxu0 0.0
    %424 = vmatprep.subr.mxu0 0.0
    %425 = vmatpush1.xpose.msra.mxu0 0.0
    %426 = vmatprep.subr.mxu0 0.0
    %427 = vmatpush1.xpose.msra.mxu0 0.0
    %428 = vmatprep.subr.mxu0 0.0
    %429 = vmatpush1.xpose.msra.mxu0 0.0
    %430 = vmatprep.subr.mxu0 0.0
    %431 = vmatpush1.xpose.msra.mxu0 0.0
    %432 = vmatprep.subr.mxu0 0.0
    %433 = vmatpush1.xpose.msra.mxu0 0.0
    %434 = vmatprep.subr.mxu0 0.0
    %435 = vmatpush1.xpose.msra.mxu0 0.0
    %436 = vmatprep.subr.mxu0 0.0
    %437 = vmatpush1.xpose.msra.mxu0 0.0
    %438 = vmatprep.subr.mxu0 0.0
    %439 = vmatpush1.xpose.msra.mxu0 0.0
    %440 = vmatprep.subr.mxu0 0.0
    %441 = vmatpush1.xpose.msra.mxu0 0.0
    %442 = vmatprep.subr.mxu0 0.0
    %443 = vmatpush1.xpose.msra.mxu0 0.0
    %444 = vmatprep.subr.mxu0 0.0
    %445 = vmatpush1.xpose.msra.mxu0 0.0
    %446 = vmatprep.subr.mxu0 0.0
    %447 = vmatpush1.xpose.msra.mxu0 0.0
    %448 = vmatprep.subr.mxu0 0.0
    %449 = vmatpush1.xpose.msra.mxu0 0.0
    %450 = vmatprep.subr.mxu0 0.0
    %451 = vmatpush1.xpose.msra.mxu0 0.0
    %452 = vmatprep.subr.mxu0 0.0
    %453 = vmatpush1.xpose.msra.mxu0 0.0
    %454 = vmatprep.subr.mxu0 0.0
    %455 = vmatpush1.xpose.msra.mxu0 0.0
    %456 = vmatprep.subr.mxu0 0.0
    %457 = vmatpush1.xpose.msra.mxu0 0.0
    %458 = vmatprep.subr.mxu0 0.0
    %459 = vmatpush1.xpose.msra.mxu0 0.0
    %460 = vmatprep.subr.mxu0 0.0
    %461 = vmatpush1.xpose.msra.mxu0 0.0
    %462 = vmatprep.subr.mxu0 0.0
    %463 = vmatpush1.xpose.msra.mxu0 0.0
    %464 = vmatprep.subr.mxu0 0.0
    %465 = vmatpush1.xpose.msra.mxu0 0.0
    %466 = vmatprep.subr.mxu0 0.0
    %467 = vmatpush1.xpose.msra.mxu0 0.0
    %468 = vmatprep.subr.mxu0 0.0
    %469 = vmatpush1.xpose.msra.mxu0 0.0
    %470 = vmatprep.mubr.f32.mxu0 0.0
    %471 = vmatmul.mubr.f32.gmra.mrb[0].mxu0 %v398
    %v472 = vpop.f32.mrb[0].mxu0
    %v473 = vadd.f32 0.0, %v472
    %v474 = vpop.f32.mrb[0].mxu0
    %475 = vmatprep.mubr.f32.mxu0 0.0
    %476 = vmatmul.mubr.f32.gmra.mrb[0].mxu0 %v400
    %v477 = vpop.f32.mrb[0].mxu0
    %v478 = vadd.f32 0.0, %v477
    %v479 = vpop.f32.mrb[0].mxu0
    %480 = vdwg.mxu0
    %v481 = vsel %vm55, %v473, -inf
    %v482 = vsel %vm56, %v478, -inf
    %v483 = vsel %vm280, %v481, -inf
    %484 = vmax.xlane.f32.xlu0 %v483
    %v485 = vpop.xlane.xlu0 %484
    %v486 = vsel %vm280, %v482, -inf
    %487 = vmax.xlane.f32.xlu0 %v486
    %v488 = vpop.xlane.xlu0 %487
    %v489 = vsub.f32 %v481, %v485
    %v490 = vsub.f32 %v482, %v488
    %v491 = vmul.f32 %v489, 1.442695
    %v492 = vpow.pop %v491
    %v493 = vmul.f32 %v490, 1.442695
    %v494 = vpow.pop %v493
    %v495 = vsel %vm280, %v492, 0.0
    %496 = vadd.xlane.f32.xlu0 %v495
    %v497 = vpop.xlane.xlu0 %496
    %v498 = vsel %vm280, %v494, 0.0
    %499 = vadd.xlane.f32.xlu0 %v498
    %v500 = vpop.xlane.xlu0 %499
    %v501 = vrcp.pop %v497
    %v502 = vrcp.pop %v500
    %v503 = vmul.f32 %v492, %v501
    %v504 = vmul.f32 %v494, %v502
    %505 = vrot.lane.b32.xlu0 %v180, 56
    %v506 = vpop.permute.xlu0 %505
    %507 = vrot.lane.b32.xlu0 %v185, 56
    %v508 = vpop.permute.xlu0 %507
    %v512 = vsel %vm280, %v503, 0
    %v515 = vsel %vm280, %v504, 0
    %517 = vmatprep.subr.mxu0 0.0
    %518 = vmatpush1.msra.mxu0 %v506
    %519 = vmatprep.subr.mxu0 0.0
    %520 = vmatpush1.msra.mxu0 %v508
    %521 = vmatprep.subr.mxu0 0.0
    %522 = vmatpush1.msra.mxu0 0.0
    %523 = vmatprep.subr.mxu0 0.0
    %524 = vmatpush1.msra.mxu0 0.0
    %525 = vmatprep.subr.mxu0 0.0
    %526 = vmatpush1.msra.mxu0 0.0
    %527 = vmatprep.subr.mxu0 0.0
    %528 = vmatpush1.msra.mxu0 0.0
    %529 = vmatprep.subr.mxu0 0.0
    %530 = vmatpush1.msra.mxu0 0.0
    %531 = vmatprep.subr.mxu0 0.0
    %532 = vmatpush1.msra.mxu0 0.0
    %533 = vmatprep.subr.mxu0 0.0
    %534 = vmatpush1.msra.mxu0 0.0
    %535 = vmatprep.subr.mxu0 0.0
    %536 = vmatpush1.msra.mxu0 0.0
    %537 = vmatprep.subr.mxu0 0.0
    %538 = vmatpush1.msra.mxu0 0.0
    %539 = vmatprep.subr.mxu0 0.0
    %540 = vmatpush1.msra.mxu0 0.0
    %541 = vmatprep.subr.mxu0 0.0
    %542 = vmatpush1.msra.mxu0 0.0
    %543 = vmatprep.subr.mxu0 0.0
    %544 = vmatpush1.msra.mxu0 0.0
    %545 = vmatprep.subr.mxu0 0.0
    %546 = vmatpush1.msra.mxu0 0.0
    %547 = vmatprep.subr.mxu0 0.0
    %548 = vmatpush1.msra.mxu0 0.0
    %549 = vmatprep.subr.mxu0 0.0
    %550 = vmatpush1.msra.mxu0 0.0
    %551 = vmatprep.subr.mxu0 0.0
    %552 = vmatpush1.msra.mxu0 0.0
    %553 = vmatprep.subr.mxu0 0.0
    %554 = vmatpush1.msra.mxu0 0.0
    %555 = vmatprep.subr.mxu0 0.0
    %556 = vmatpush1.msra.mxu0 0.0
    %557 = vmatprep.subr.mxu0 0.0
    %558 = vmatpush1.msra.mxu0 0.0
    %559 = vmatprep.subr.mxu0 0.0
    %560 = vmatpush1.msra.mxu0 0.0
    %561 = vmatprep.subr.mxu0 0.0
    %562 = vmatpush1.msra.mxu0 0.0
    %563 = vmatprep.subr.mxu0 0.0
    %564 = vmatpush1.msra.mxu0 0.0
    %565 = vmatprep.subr.mxu0 0.0
    %566 = vmatpush1.msra.mxu0 0.0
    %567 = vmatprep.subr.mxu0 0.0
    %568 = vmatpush1.msra.mxu0 0.0
    %569 = vmatprep.subr.mxu0 0.0
    %570 = vmatpush1.msra.mxu0 0.0
    %571 = vmatprep.subr.mxu0 0.0
    %572 = vmatpush1.msra.mxu0 0.0
    %573 = vmatprep.subr.mxu0 0.0
    %574 = vmatpush1.msra.mxu0 0.0
    %575 = vmatprep.subr.mxu0 0.0
    %576 = vmatpush1.msra.mxu0 0.0
    %577 = vmatprep.subr.mxu0 0.0
    %578 = vmatpush1.msra.mxu0 0.0
    %579 = vmatprep.subr.mxu0 0.0
    %580 = vmatpush1.msra.mxu0 0.0
    %581 = vmatprep.mubr.f32.mxu0 0.0
    %582 = vmatmul.mubr.f32.gmra.mrb[0].mxu0 %v512
    %v583 = vpop.f32.mrb[0].mxu0
    %v584 = vadd.f32 0.0, %v583
    %v585 = vpop.f32.mrb[0].mxu0
    %586 = vmatprep.mubr.f32.mxu0 0.0
    %587 = vmatmul.mubr.f32.gmra.mrb[0].mxu0 %v515
    %v588 = vpop.f32.mrb[0].mxu0
    %v589 = vadd.f32 0.0, %v588
    %v590 = vpop.f32.mrb[0].mxu0
    %591 = vdwg.mxu0
    %592 = vrot.lane.b32.xlu0 %v180, 112
    %v593 = vpop.permute.xlu0 %592
    %594 = vrot.lane.b32.xlu0 %v185, 112
    %v595 = vpop.permute.xlu0 %594
    %596 = vrot.lane.b32.xlu0 %v180, 80
    %v597 = vpop.permute.xlu0 %596
    %598 = vrot.lane.b32.xlu0 %v185, 80
    %v599 = vpop.permute.xlu0 %598
    %v600 = vsel %vm194, %v593, 0
    %v602 = vsel %vm194, %v595, 0
    %v604 = vsel %vm194, %v597, 0
    %v606 = vsel %vm194, %v599, 0
    %608 = vmatprep.subr.mxu0 0.0
    %609 = vmatpush1.xpose.msra.mxu0 %v604
    %610 = vmatprep.subr.mxu0 0.0
    %611 = vmatpush1.xpose.msra.mxu0 %v606
    %612 = vmatprep.subr.mxu0 0.0
    %613 = vmatpush1.xpose.msra.mxu0 0.0
    %614 = vmatprep.subr.mxu0 0.0
    %615 = vmatpush1.xpose.msra.mxu0 0.0
    %616 = vmatprep.subr.mxu0 0.0
    %617 = vmatpush1.xpose.msra.mxu0 0.0
    %618 = vmatprep.subr.mxu0 0.0
    %619 = vmatpush1.xpose.msra.mxu0 0.0
    %620 = vmatprep.subr.mxu0 0.0
    %621 = vmatpush1.xpose.msra.mxu0 0.0
    %622 = vmatprep.subr.mxu0 0.0
    %623 = vmatpush1.xpose.msra.mxu0 0.0
    %624 = vmatprep.subr.mxu0 0.0
    %625 = vmatpush1.xpose.msra.mxu0 0.0
    %626 = vmatprep.subr.mxu0 0.0
    %627 = vmatpush1.xpose.msra.mxu0 0.0
    %628 = vmatprep.subr.mxu0 0.0
    %629 = vmatpush1.xpose.msra.mxu0 0.0
    %630 = vmatprep.subr.mxu0 0.0
    %631 = vmatpush1.xpose.msra.mxu0 0.0
    %632 = vmatprep.subr.mxu0 0.0
    %633 = vmatpush1.xpose.msra.mxu0 0.0
    %634 = vmatprep.subr.mxu0 0.0
    %635 = vmatpush1.xpose.msra.mxu0 0.0
    %636 = vmatprep.subr.mxu0 0.0
    %637 = vmatpush1.xpose.msra.mxu0 0.0
    %638 = vmatprep.subr.mxu0 0.0
    %639 = vmatpush1.xpose.msra.mxu0 0.0
    %640 = vmatprep.subr.mxu0 0.0
    %641 = vmatpush1.xpose.msra.mxu0 0.0
    %642 = vmatprep.subr.mxu0 0.0
    %643 = vmatpush1.xpose.msra.mxu0 0.0
    %644 = vmatprep.subr.mxu0 0.0
    %645 = vmatpush1.xpose.msra.mxu0 0.0
    %646 = vmatprep.subr.mxu0 0.0
    %647 = vmatpush1.xpose.msra.mxu0 0.0
    %648 = vmatprep.subr.mxu0 0.0
    %649 = vmatpush1.xpose.msra.mxu0 0.0
    %650 = vmatprep.subr.mxu0 0.0
    %651 = vmatpush1.xpose.msra.mxu0 0.0
    %652 = vmatprep.subr.mxu0 0.0
    %653 = vmatpush1.xpose.msra.mxu0 0.0
    %654 = vmatprep.subr.mxu0 0.0
    %655 = vmatpush1.xpose.msra.mxu0 0.0
    %656 = vmatprep.subr.mxu0 0.0
    %657 = vmatpush1.xpose.msra.mxu0 0.0
    %658 = vmatprep.subr.mxu0 0.0
    %659 = vmatpush1.xpose.msra.mxu0 0.0
    %660 = vmatprep.subr.mxu0 0.0
    %661 = vmatpush1.xpose.msra.mxu0 0.0
    %662 = vmatprep.subr.mxu0 0.0
    %663 = vmatpush1.xpose.msra.mxu0 0.0
    %664 = vmatprep.subr.mxu0 0.0
    %665 = vmatpush1.xpose.msra.mxu0 0.0
    %666 = vmatprep.subr.mxu0 0.0
    %667 = vmatpush1.xpose.msra.mxu0 0.0
    %668 = vmatprep.subr.mxu0 0.0
    %669 = vmatpush1.xpose.msra.mxu0 0.0
    %670 = vmatprep.subr.mxu0 0.0
    %671 = vmatpush1.xpose.msra.mxu0 0.0
    %672 = vmatprep.mubr.f32.mxu0 0.0
    %673 = vmatmul.mubr.f32.gmra.mrb[0].mxu0 %v600
    %v674 = vpop.f32.mrb[0].mxu0
    %v675 = vadd.f32 0.0, %v674
    %v676 = vpop.f32.mrb[0].mxu0
    %677 = vmatprep.mubr.f32.mxu0 0.0
    %678 = vmatmul.mubr.f32.gmra.mrb[0].mxu0 %v602
    %v679 = vpop.f32.mrb[0].mxu0
    %v680 = vadd.f32 0.0, %v679
    %v681 = vpop.f32.mrb[0].mxu0
    %682 = vdwg.mxu0
    %v683 = vsel %vm55, %v675, -inf
    %v684 = vsel %vm56, %v680, -inf
    %v685 = vsel %vm280, %v683, -inf
    %686 = vmax.xlane.f32.xlu0 %v685
    %v687 = vpop.xlane.xlu0 %686
    %v688 = vsel %vm280, %v684, -inf
    %689 = vmax.xlane.f32.xlu0 %v688
    %v690 = vpop.xlane.xlu0 %689
    %v691 = vsub.f32 %v683, %v687
    %v692 = vsub.f32 %v684, %v690
    %v693 = vmul.f32 %v691, 1.442695
    %v694 = vpow.pop %v693
    %v695 = vmul.f32 %v692, 1.442695
    %v696 = vpow.pop %v695
    %v697 = vsel %vm280, %v694, 0.0
    %698 = vadd.xlane.f32.xlu0 %v697
    %v699 = vpop.xlane.xlu0 %698
    %v700 = vsel %vm280, %v696, 0.0
    %701 = vadd.xlane.f32.xlu0 %v700
    %v702 = vpop.xlane.xlu0 %701
    %v703 = vrcp.pop %v699
    %v704 = vrcp.pop %v702
    %v705 = vmul.f32 %v694, %v703
    %v706 = vmul.f32 %v696, %v704
    %707 = vrot.lane.b32.xlu0 %v180, 48
    %v708 = vpop.permute.xlu0 %707
    %709 = vrot.lane.b32.xlu0 %v185, 48
    %v710 = vpop.permute.xlu0 %709
    %v714 = vsel %vm280, %v705, 0
    %v717 = vsel %vm280, %v706, 0
    %719 = vmatprep.subr.mxu0 0.0
    %720 = vmatpush1.msra.mxu0 %v708
    %721 = vmatprep.subr.mxu0 0.0
    %722 = vmatpush1.msra.mxu0 %v710
    %723 = vmatprep.subr.mxu0 0.0
    %724 = vmatpush1.msra.mxu0 0.0
    %725 = vmatprep.subr.mxu0 0.0
    %726 = vmatpush1.msra.mxu0 0.0
    %727 = vmatprep.subr.mxu0 0.0
    %728 = vmatpush1.msra.mxu0 0.0
    %729 = vmatprep.subr.mxu0 0.0
    %730 = vmatpush1.msra.mxu0 0.0
    %731 = vmatprep.subr.mxu0 0.0
    %732 = vmatpush1.msra.mxu0 0.0
    %733 = vmatprep.subr.mxu0 0.0
    %734 = vmatpush1.msra.mxu0 0.0
    %735 = vmatprep.subr.mxu0 0.0
    %736 = vmatpush1.msra.mxu0 0.0
    %737 = vmatprep.subr.mxu0 0.0
    %738 = vmatpush1.msra.mxu0 0.0
    %739 = vmatprep.subr.mxu0 0.0
    %740 = vmatpush1.msra.mxu0 0.0
    %741 = vmatprep.subr.mxu0 0.0
    %742 = vmatpush1.msra.mxu0 0.0
    %743 = vmatprep.subr.mxu0 0.0
    %744 = vmatpush1.msra.mxu0 0.0
    %745 = vmatprep.subr.mxu0 0.0
    %746 = vmatpush1.msra.mxu0 0.0
    %747 = vmatprep.subr.mxu0 0.0
    %748 = vmatpush1.msra.mxu0 0.0
    %749 = vmatprep.subr.mxu0 0.0
    %750 = vmatpush1.msra.mxu0 0.0
    %751 = vmatprep.subr.mxu0 0.0
    %752 = vmatpush1.msra.mxu0 0.0
    %753 = vmatprep.subr.mxu0 0.0
    %754 = vmatpush1.msra.mxu0 0.0
    %755 = vmatprep.subr.mxu0 0.0
    %756 = vmatpush1.msra.mxu0 0.0
    %757 = vmatprep.subr.mxu0 0.0
    %758 = vmatpush1.msra.mxu0 0.0
    %759 = vmatprep.subr.mxu0 0.0
    %760 = vmatpush1.msra.mxu0 0.0
    %761 = vmatprep.subr.mxu0 0.0
    %762 = vmatpush1.msra.mxu0 0.0
    %763 = vmatprep.subr.mxu0 0.0
    %764 = vmatpush1.msra.mxu0 0.0
    %765 = vmatprep.subr.mxu0 0.0
    %766 = vmatpush1.msra.mxu0 0.0
    %767 = vmatprep.subr.mxu0 0.0
    %768 = vmatpush1.msra.mxu0 0.0
    %769 = vmatprep.subr.mxu0 0.0
    %770 = vmatpush1.msra.mxu0 0.0
    %771 = vmatprep.subr.mxu0 0.0
    %772 = vmatpush1.msra.mxu0 0.0
    %773 = vmatprep.subr.mxu0 0.0
    %774 = vmatpush1.msra.mxu0 0.0
    %775 = vmatprep.subr.mxu0 0.0
    %776 = vmatpush1.msra.mxu0 0.0
    %777 = vmatprep.subr.mxu0 0.0
    %778 = vmatpush1.msra.mxu0 0.0
    %779 = vmatprep.subr.mxu0 0.0
    %780 = vmatpush1.msra.mxu0 0.0
    %781 = vmatprep.subr.mxu0 0.0
    %782 = vmatpush1.msra.mxu0 0.0
    %783 = vmatprep.mubr.f32.mxu0 0.0
    %784 = vmatmul.mubr.f32.gmra.mrb[0].mxu0 %v714
    %v785 = vpop.f32.mrb[0].mxu0
    %v786 = vadd.f32 0.0, %v785
    %v787 = vpop.f32.mrb[0].mxu0
    %788 = vmatprep.mubr.f32.mxu0 0.0
    %789 = vmatmul.mubr.f32.gmra.mrb[0].mxu0 %v717
    %v790 = vpop.f32.mrb[0].mxu0
    %v791 = vadd.f32 0.0, %v790
    %v792 = vpop.f32.mrb[0].mxu0
    %793 = vdwg.mxu0
    %794 = vrot.lane.b32.xlu0 %v180, 104
    %v795 = vpop.permute.xlu0 %794
    %796 = vrot.lane.b32.xlu0 %v185, 104
    %v797 = vpop.permute.xlu0 %796
    %798 = vrot.lane.b32.xlu0 %v180, 72
    %v799 = vpop.permute.xlu0 %798
    %800 = vrot.lane.b32.xlu0 %v185, 72
    %v801 = vpop.permute.xlu0 %800
    %v802 = vsel %vm194, %v795, 0
    %v804 = vsel %vm194, %v797, 0
    %v806 = vsel %vm194, %v799, 0
    %v808 = vsel %vm194, %v801, 0
    %810 = vmatprep.subr.mxu0 0.0
    %811 = vmatpush1.xpose.msra.mxu0 %v806
    %812 = vmatprep.subr.mxu0 0.0
    %813 = vmatpush1.xpose.msra.mxu0 %v808
    %814 = vmatprep.subr.mxu0 0.0
    %815 = vmatpush1.xpose.msra.mxu0 0.0
    %816 = vmatprep.subr.mxu0 0.0
    %817 = vmatpush1.xpose.msra.mxu0 0.0
    %818 = vmatprep.subr.mxu0 0.0
    %819 = vmatpush1.xpose.msra.mxu0 0.0
    %820 = vmatprep.subr.mxu0 0.0
    %821 = vmatpush1.xpose.msra.mxu0 0.0
    %822 = vmatprep.subr.mxu0 0.0
    %823 = vmatpush1.xpose.msra.mxu0 0.0
    %824 = vmatprep.subr.mxu0 0.0
    %825 = vmatpush1.xpose.msra.mxu0 0.0
    %826 = vmatprep.subr.mxu0 0.0
    %827 = vmatpush1.xpose.msra.mxu0 0.0
    %828 = vmatprep.subr.mxu0 0.0
    %829 = vmatpush1.xpose.msra.mxu0 0.0
    %830 = vmatprep.subr.mxu0 0.0
    %831 = vmatpush1.xpose.msra.mxu0 0.0
    %832 = vmatprep.subr.mxu0 0.0
    %833 = vmatpush1.xpose.msra.mxu0 0.0
    %834 = vmatprep.subr.mxu0 0.0
    %835 = vmatpush1.xpose.msra.mxu0 0.0
    %836 = vmatprep.subr.mxu0 0.0
    %837 = vmatpush1.xpose.msra.mxu0 0.0
    %838 = vmatprep.subr.mxu0 0.0
    %839 = vmatpush1.xpose.msra.mxu0 0.0
    %840 = vmatprep.subr.mxu0 0.0
    %841 = vmatpush1.xpose.msra.mxu0 0.0
    %842 = vmatprep.subr.mxu0 0.0
    %843 = vmatpush1.xpose.msra.mxu0 0.0
    %844 = vmatprep.subr.mxu0 0.0
    %845 = vmatpush1.xpose.msra.mxu0 0.0
    %846 = vmatprep.subr.mxu0 0.0
    %847 = vmatpush1.xpose.msra.mxu0 0.0
    %848 = vmatprep.subr.mxu0 0.0
    %849 = vmatpush1.xpose.msra.mxu0 0.0
    %850 = vmatprep.subr.mxu0 0.0
    %851 = vmatpush1.xpose.msra.mxu0 0.0
    %852 = vmatprep.subr.mxu0 0.0
    %853 = vmatpush1.xpose.msra.mxu0 0.0
    %854 = vmatprep.subr.mxu0 0.0
    %855 = vmatpush1.xpose.msra.mxu0 0.0
    %856 = vmatprep.subr.mxu0 0.0
    %857 = vmatpush1.xpose.msra.mxu0 0.0
    %858 = vmatprep.subr.mxu0 0.0
    %859 = vmatpush1.xpose.msra.mxu0 0.0
    %860 = vmatprep.subr.mxu0 0.0
    %861 = vmatpush1.xpose.msra.mxu0 0.0
    %862 = vmatprep.subr.mxu0 0.0
    %863 = vmatpush1.xpose.msra.mxu0 0.0
    %864 = vmatprep.subr.mxu0 0.0
    %865 = vmatpush1.xpose.msra.mxu0 0.0
    %866 = vmatprep.subr.mxu0 0.0
    %867 = vmatpush1.xpose.msra.mxu0 0.0
    %868 = vmatprep.subr.mxu0 0.0
    %869 = vmatpush1.xpose.msra.mxu0 0.0
    %870 = vmatprep.subr.mxu0 0.0
    %871 = vmatpush1.xpose.msra.mxu0 0.0
    %872 = vmatprep.subr.mxu0 0.0
    %873 = vmatpush1.xpose.msra.mxu0 0.0
    %874 = vmatprep.mubr.f32.mxu0 0.0
    %875 = vmatmul.mubr.f32.gmra.mrb[0].mxu0 %v802
    %v876 = vpop.f32.mrb[0].mxu0
    %v877 = vadd.f32 0.0, %v876
    %v878 = vpop.f32.mrb[0].mxu0
    %879 = vmatprep.mubr.f32.mxu0 0.0
    %880 = vmatmul.mubr.f32.gmra.mrb[0].mxu0 %v804
    %v881 = vpop.f32.mrb[0].mxu0
    %v882 = vadd.f32 0.0, %v881
    %v883 = vpop.f32.mrb[0].mxu0
    %884 = vdwg.mxu0
    %v885 = vsel %vm55, %v877, -inf
    %v886 = vsel %vm56, %v882, -inf
    %v887 = vsel %vm280, %v885, -inf
    %888 = vmax.xlane.f32.xlu0 %v887
    %v889 = vpop.xlane.xlu0 %888
    %v890 = vsel %vm280, %v886, -inf
    %891 = vmax.xlane.f32.xlu0 %v890
    %v892 = vpop.xlane.xlu0 %891
    %v893 = vsub.f32 %v885, %v889
    %v894 = vsub.f32 %v886, %v892
    %v895 = vmul.f32 %v893, 1.442695
    %v896 = vpow.pop %v895
    %v897 = vmul.f32 %v894, 1.442695
    %v898 = vpow.pop %v897
    %v899 = vsel %vm280, %v896, 0.0
    %900 = vadd.xlane.f32.xlu0 %v899
    %v901 = vpop.xlane.xlu0 %900
    %v902 = vsel %vm280, %v898, 0.0
    %903 = vadd.xlane.f32.xlu0 %v902
    %v904 = vpop.xlane.xlu0 %903
    %v905 = vrcp.pop %v901
    %v906 = vrcp.pop %v904
    %v907 = vmul.f32 %v896, %v905
    %v908 = vmul.f32 %v898, %v906
    %909 = vrot.lane.b32.xlu0 %v180, 40
    %v910 = vpop.permute.xlu0 %909
    %911 = vrot.lane.b32.xlu0 %v185, 40
    %v912 = vpop.permute.xlu0 %911
    %v916 = vsel %vm280, %v907, 0
    %v919 = vsel %vm280, %v908, 0
    %921 = vmatprep.subr.mxu0 0.0
    %922 = vmatpush1.msra.mxu0 %v910
    %923 = vmatprep.subr.mxu0 0.0
    %924 = vmatpush1.msra.mxu0 %v912
    %925 = vmatprep.subr.mxu0 0.0
    %926 = vmatpush1.msra.mxu0 0.0
    %927 = vmatprep.subr.mxu0 0.0
    %928 = vmatpush1.msra.mxu0 0.0
    %929 = vmatprep.subr.mxu0 0.0
    %930 = vmatpush1.msra.mxu0 0.0
    %931 = vmatprep.subr.mxu0 0.0
    %932 = vmatpush1.msra.mxu0 0.0
    %933 = vmatprep.subr.mxu0 0.0
    %934 = vmatpush1.msra.mxu0 0.0
    %935 = vmatprep.subr.mxu0 0.0
    %936 = vmatpush1.msra.mxu0 0.0
    %937 = vmatprep.subr.mxu0 0.0
    %938 = vmatpush1.msra.mxu0 0.0
    %939 = vmatprep.subr.mxu0 0.0
    %940 = vmatpush1.msra.mxu0 0.0
    %941 = vmatprep.subr.mxu0 0.0
    %942 = vmatpush1.msra.mxu0 0.0
    %943 = vmatprep.subr.mxu0 0.0
    %944 = vmatpush1.msra.mxu0 0.0
    %945 = vmatprep.subr.mxu0 0.0
    %946 = vmatpush1.msra.mxu0 0.0
    %947 = vmatprep.subr.mxu0 0.0
    %948 = vmatpush1.msra.mxu0 0.0
    %949 = vmatprep.subr.mxu0 0.0
    %950 = vmatpush1.msra.mxu0 0.0
    %951 = vmatprep.subr.mxu0 0.0
    %952 = vmatpush1.msra.mxu0 0.0
    %953 = vmatprep.subr.mxu0 0.0
    %954 = vmatpush1.msra.mxu0 0.0
    %955 = vmatprep.subr.mxu0 0.0
    %956 = vmatpush1.msra.mxu0 0.0
    %957 = vmatprep.subr.mxu0 0.0
    %958 = vmatpush1.msra.mxu0 0.0
    %959 = vmatprep.subr.mxu0 0.0
    %960 = vmatpush1.msra.mxu0 0.0
    %961 = vmatprep.subr.mxu0 0.0
    %962 = vmatpush1.msra.mxu0 0.0
    %963 = vmatprep.subr.mxu0 0.0
    %964 = vmatpush1.msra.mxu0 0.0
    %965 = vmatprep.subr.mxu0 0.0
    %966 = vmatpush1.msra.mxu0 0.0
    %967 = vmatprep.subr.mxu0 0.0
    %968 = vmatpush1.msra.mxu0 0.0
    %969 = vmatprep.subr.mxu0 0.0
    %970 = vmatpush1.msra.mxu0 0.0
    %971 = vmatprep.subr.mxu0 0.0
    %972 = vmatpush1.msra.mxu0 0.0
    %973 = vmatprep.subr.mxu0 0.0
    %974 = vmatpush1.msra.mxu0 0.0
    %975 = vmatprep.subr.mxu0 0.0
    %976 = vmatpush1.msra.mxu0 0.0
    %977 = vmatprep.subr.mxu0 0.0
    %978 = vmatpush1.msra.mxu0 0.0
    %979 = vmatprep.subr.mxu0 0.0
    %980 = vmatpush1.msra.mxu0 0.0
    %981 = vmatprep.subr.mxu0 0.0
    %982 = vmatpush1.msra.mxu0 0.0
    %983 = vmatprep.subr.mxu0 0.0
    %984 = vmatpush1.msra.mxu0 0.0
    %985 = vmatprep.mubr.f32.mxu0 0.0
    %986 = vmatmul.mubr.f32.gmra.mrb[0].mxu0 %v916
    %v987 = vpop.f32.mrb[0].mxu0
    %v988 = vadd.f32 0.0, %v987
    %v989 = vpop.f32.mrb[0].mxu0
    %990 = vmatprep.mubr.f32.mxu0 0.0
    %991 = vmatmul.mubr.f32.gmra.mrb[0].mxu0 %v919
    %v992 = vpop.f32.mrb[0].mxu0
    %v993 = vadd.f32 0.0, %v992
    %v994 = vpop.f32.mrb[0].mxu0
    %995 = vdwg.mxu0
    %998 = vrot.lane.b32.xlu0 %v584, 8
    %v999 = vpop.permute.xlu0 %998
    %1000 = vrot.lane.b32.xlu0 %v589, 8
    %v1001 = vpop.permute.xlu0 %1000
    %1006 = vrot.lane.b32.xlu0 %v786, 16
    %v1007 = vpop.permute.xlu0 %1006
    %1008 = vrot.lane.b32.xlu0 %v791, 16
    %v1009 = vpop.permute.xlu0 %1008
    %1014 = vrot.lane.b32.xlu0 %v988, 24
    %v1015 = vpop.permute.xlu0 %1014
    %1016 = vrot.lane.b32.xlu0 %v993, 24
    %v1017 = vpop.permute.xlu0 %1016
    %v1020 = vsel %vm194, %v382, %v999
    %v1021 = vsel %vm194, %v387, %v1001
    %v1022 = vsel %vm280, %v1020, %v1007
    %v1023 = vsel %vm280, %v1021, %v1009
    %vm1024 = vcmask 195584
    %v1025 = vsel %vm1024, %v1022, %v1015
    %v1026 = vsel %vm1024, %v1023, %v1017
    %v1027 = vld [vmem:[%s4] sm:$0xff]
    %v1028 = vld [vmem:[%s4 + $0x8] sm:$0xff]
    %v1029 = vld [vmem:[%s4 + $0x10] sm:$0xff]
    %v1030 = vld [vmem:[%s4 + $0x18] sm:$0xff]
    %v1032 = vsel %vm59, %v1025, 0
    %v1035 = vsel %vm59, %v1026, 0
    %1037 = vmatprep.subr.mxu0 0.0
    %1038 = vmatpush1.msra.mxu0 %v1027
    %1039 = vmatprep.subr.mxu0 0.0
    %1040 = vmatpush1.msra.mxu0 %v1028
    %1041 = vmatprep.subr.mxu0 0.0
    %1042 = vmatpush1.msra.mxu0 %v1029
    %1043 = vmatprep.subr.mxu0 0.0
    %1044 = vmatpush1.msra.mxu0 %v1030
    %1045 = vmatprep.subr.mxu0 0.0
    %1046 = vmatpush1.msra.mxu0 0.0
    %1047 = vmatprep.subr.mxu0 0.0
    %1048 = vmatpush1.msra.mxu0 0.0
    %1049 = vmatprep.subr.mxu0 0.0
    %1050 = vmatpush1.msra.mxu0 0.0
    %1051 = vmatprep.subr.mxu0 0.0
    %1052 = vmatpush1.msra.mxu0 0.0
    %1053 = vmatprep.subr.mxu0 0.0
    %1054 = vmatpush1.msra.mxu0 0.0
    %1055 = vmatprep.subr.mxu0 0.0
    %1056 = vmatpush1.msra.mxu0 0.0
    %1057 = vmatprep.subr.mxu0 0.0
    %1058 = vmatpush1.msra.mxu0 0.0
    %1059 = vmatprep.subr.mxu0 0.0
    %1060 = vmatpush1.msra.mxu0 0.0
    %1061 = vmatprep.subr.mxu0 0.0
    %1062 = vmatpush1.msra.mxu0 0.0
    %1063 = vmatprep.subr.mxu0 0.0
    %1064 = vmatpush1.msra.mxu0 0.0
    %1065 = vmatprep.subr.mxu0 0.0
    %1066 = vmatpush1.msra.mxu0 0.0
    %1067 = vmatprep.subr.mxu0 0.0
    %1068 = vmatpush1.msra.mxu0 0.0
    %1069 = vmatprep.subr.mxu0 0.0
    %1070 = vmatpush1.msra.mxu0 0.0
    %1071 = vmatprep.subr.mxu0 0.0
    %1072 = vmatpush1.msra.mxu0 0.0
    %1073 = vmatprep.subr.mxu0 0.0
    %1074 = vmatpush1.msra.mxu0 0.0
    %1075 = vmatprep.subr.mxu0 0.0
    %1076 = vmatpush1.msra.mxu0 0.0
    %1077 = vmatprep.subr.mxu0 0.0
    %1078 = vmatpush1.msra.mxu0 0.0
    %1079 = vmatprep.subr.mxu0 0.0
    %1080 = vmatpush1.msra.mxu0 0.0
    %1081 = vmatprep.subr.mxu0 0.0
    %1082 = vmatpush1.msra.mxu0 0.0
    %1083 = vmatprep.subr.mxu0 0.0
    %1084 = vmatpush1.msra.mxu0 0.0
    %1085 = vmatprep.subr.mxu0 0.0
    %1086 = vmatpush1.msra.mxu0 0.0
    %1087 = vmatprep.subr.mxu0 0.0
    %1088 = vmatpush1.msra.mxu0 0.0
    %1089 = vmatprep.subr.mxu0 0.0
    %1090 = vmatpush1.msra.mxu0 0.0
    %1091 = vmatprep.subr.mxu0 0.0
    %1092 = vmatpush1.msra.mxu0 0.0
    %1093 = vmatprep.subr.mxu0 0.0
    %1094 = vmatpush1.msra.mxu0 0.0
    %1095 = vmatprep.subr.mxu0 0.0
    %1096 = vmatpush1.msra.mxu0 0.0
    %1097 = vmatprep.subr.mxu0 0.0
    %1098 = vmatpush1.msra.mxu0 0.0
    %1099 = vmatprep.subr.mxu0 0.0
    %1100 = vmatpush1.msra.mxu0 0.0
    %1101 = vmatprep.mubr.f32.mxu0 0.0
    %1102 = vmatmul.mubr.f32.gmra.mrb[0].mxu0 %v1032
    %v1103 = vpop.f32.mrb[0].mxu0
    %v1104 = vadd.f32 0.0, %v1103
    %v1105 = vpop.f32.mrb[0].mxu0
    %1106 = vmatprep.mubr.f32.mxu0 0.0
    %1107 = vmatmul.mubr.f32.gmra.mrb[0].mxu0 %v1035
    %v1108 = vpop.f32.mrb[0].mxu0
    %v1109 = vadd.f32 0.0, %v1108
    %v1110 = vpop.f32.mrb[0].mxu0
    %1111 = vdwg.mxu0
    %v1112 = vadd.f32 %v42, %v1104
    %v1113 = vadd.f32 %v43, %v1109
    %v1114 = vld [vmem:[%s5] sm:$0x1]
    %v1116 = vlaneseq
    %v1117 = vshrl.u32 %v1116, 7
    %v1118 = vsub.s32 0, %v1117
    %v1119 = vrot.slane %v1114, %v1118
    %v1121 = vadd.f32 %v1112, %v1119
    %v1122 = vadd.f32 %v1113, %v1119
    %v1123 = vld [vmem:[%s6] sm:$0x1]
    %v1124 = vld [vmem:[%s7] sm:$0x1]
    %v1125 = vsel %vm59, %v1121, 0.0
    %1126 = vadd.xlane.f32.xlu0 %v1125
    %v1127 = vpop.xlane.xlu0 %1126
    %v1128 = vsel %vm59, %v1122, 0.0
    %1129 = vadd.xlane.f32.xlu0 %v1128
    %v1130 = vpop.xlane.xlu0 %1129
    %v1131 = vmul.f32 %v1127, %v66
    %v1132 = vmul.f32 %v1130, %v66
    %v1133 = vsub.f32 %v1121, %v1131
    %v1134 = vsub.f32 %v1122, %v1132
    %v1135 = vmul.f32 %v1133, %v1133
    %v1136 = vmul.f32 %v1134, %v1134
    %v1137 = vsel %vm59, %v1135, 0.0
    %1138 = vadd.xlane.f32.xlu0 %v1137
    %v1139 = vpop.xlane.xlu0 %1138
    %v1140 = vsel %vm59, %v1136, 0.0
    %1141 = vadd.xlane.f32.xlu0 %v1140
    %v1142 = vpop.xlane.xlu0 %1141
    %v1143 = vmul.f32 %v1139, %v66
    %v1144 = vmul.f32 %v1142, %v66
    %v1145 = vadd.f32 %v1143, 1e-05
    %v1146 = vadd.f32 %v1144, 1e-05
    %v1147 = vrsqrt.pop %v1145
    %v1148 = vrsqrt.pop %v1146
    %v1149 = vmul.f32 %v1133, %v1147
    %v1150 = vmul.f32 %v1134, %v1148
    %v1152 = vlaneseq
    %v1153 = vshrl.u32 %v1152, 7
    %v1154 = vsub.s32 0, %v1153
    %v1155 = vrot.slane %v1123, %v1154
    %v1157 = vmul.f32 %v1149, %v1155
    %v1158 = vmul.f32 %v1150, %v1155
    %v1160 = vlaneseq
    %v1161 = vshrl.u32 %v1160, 7
    %v1162 = vsub.s32 0, %v1161
    %v1163 = vrot.slane %v1124, %v1162
    %v1165 = vadd.f32 %v1157, %v1163
    %v1166 = vadd.f32 %v1158, %v1163
    %v1167 = vld [vmem:[%s8] sm:$0xff]
    %v1168 = vld [vmem:[%s8 + $0x8] sm:$0xff]
    %v1169 = vld [vmem:[%s8 + $0x10] sm:$0xff]
    %v1170 = vld [vmem:[%s8 + $0x18] sm:$0xff]
    %v1171 = vld [vmem:[%s9] sm:$0x1]
    %v1173 = vlaneseq
    %v1174 = vshrl.u32 %v1173, 7
    %v1175 = vsub.s32 0, %v1174
    %v1176 = vrot.slane %v1171, %v1175
    %v1179 = vsel %vm59, %v1165, 0
    %v1182 = vsel %vm59, %v1166, 0
    %1184 = vmatprep.subr.mxu0 0.0
    %1185 = vmatpush1.msra.mxu0 %v1167
    %1186 = vmatprep.subr.mxu0 0.0
    %1187 = vmatpush1.msra.mxu0 %v1168
    %1188 = vmatprep.subr.mxu0 0.0
    %1189 = vmatpush1.msra.mxu0 %v1169
    %1190 = vmatprep.subr.mxu0 0.0
    %1191 = vmatpush1.msra.mxu0 %v1170
    %1192 = vmatprep.subr.mxu0 0.0
    %1193 = vmatpush1.msra.mxu0 0.0
    %1194 = vmatprep.subr.mxu0 0.0
    %1195 = vmatpush1.msra.mxu0 0.0
    %1196 = vmatprep.subr.mxu0 0.0
    %1197 = vmatpush1.msra.mxu0 0.0
    %1198 = vmatprep.subr.mxu0 0.0
    %1199 = vmatpush1.msra.mxu0 0.0
    %1200 = vmatprep.subr.mxu0 0.0
    %1201 = vmatpush1.msra.mxu0 0.0
    %1202 = vmatprep.subr.mxu0 0.0
    %1203 = vmatpush1.msra.mxu0 0.0
    %1204 = vmatprep.subr.mxu0 0.0
    %1205 = vmatpush1.msra.mxu0 0.0
    %1206 = vmatprep.subr.mxu0 0.0
    %1207 = vmatpush1.msra.mxu0 0.0
    %1208 = vmatprep.subr.mxu0 0.0
    %1209 = vmatpush1.msra.mxu0 0.0
    %1210 = vmatprep.subr.mxu0 0.0
    %1211 = vmatpush1.msra.mxu0 0.0
    %1212 = vmatprep.subr.mxu0 0.0
    %1213 = vmatpush1.msra.mxu0 0.0
    %1214 = vmatprep.subr.mxu0 0.0
    %1215 = vmatpush1.msra.mxu0 0.0
    %1216 = vmatprep.subr.mxu0 0.0
    %1217 = vmatpush1.msra.mxu0 0.0
    %1218 = vmatprep.subr.mxu0 0.0
    %1219 = vmatpush1.msra.mxu0 0.0
    %1220 = vmatprep.subr.mxu0 0.0
    %1221 = vmatpush1.msra.mxu0 0.0
    %1222 = vmatprep.subr.mxu0 0.0
    %1223 = vmatpush1.msra.mxu0 0.0
    %1224 = vmatprep.subr.mxu0 0.0
    %1225 = vmatpush1.msra.mxu0 0.0
    %1226 = vmatprep.subr.mxu0 0.0
    %1227 = vmatpush1.msra.mxu0 0.0
    %1228 = vmatprep.subr.mxu0 0.0
    %1229 = vmatpush1.msra.mxu0 0.0
    %1230 = vmatprep.subr.mxu0 0.0
    %1231 = vmatpush1.msra.mxu0 0.0
    %1232 = vmatprep.subr.mxu0 0.0
    %1233 = vmatpush1.msra.mxu0 0.0
    %1234 = vmatprep.subr.mxu0 0.0
    %1235 = vmatpush1.msra.mxu0 0.0
    %1236 = vmatprep.subr.mxu0 0.0
    %1237 = vmatpush1.msra.mxu0 0.0
    %1238 = vmatprep.subr.mxu0 0.0
    %1239 = vmatpush1.msra.mxu0 0.0
    %1240 = vmatprep.subr.mxu0 0.0
    %1241 = vmatpush1.msra.mxu0 0.0
    %1242 = vmatprep.subr.mxu0 0.0
    %1243 = vmatpush1.msra.mxu0 0.0
    %1244 = vmatprep.subr.mxu0 0.0
    %1245 = vmatpush1.msra.mxu0 0.0
    %1246 = vmatprep.subr.mxu0 0.0
    %1247 = vmatpush1.msra.mxu0 0.0
    %1248 = vmatprep.mubr.f32.mxu0 0.0
    %1249 = vmatmul.mubr.f32.gmra.mrb[0].mxu0 %v1179
    %v1250 = vpop.f32.mrb[0].mxu0
    %v1251 = vadd.f32 %v1176, %v1250
    %v1252 = vpop.f32.mrb[0].mxu0
    %1253 = vmatprep.mubr.f32.mxu0 0.0
    %1254 = vmatmul.mubr.f32.gmra.mrb[0].mxu0 %v1182
    %v1255 = vpop.f32.mrb[0].mxu0
    %v1256 = vadd.f32 %v1176, %v1255
    %v1257 = vpop.f32.mrb[0].mxu0
    %1258 = vdwg.mxu0
    %v1259 = vmax.f32 %v1251, 0.0
    %v1260 = vmax.f32 %v1256, 0.0
    %v1261 = vld [vmem:[%s10] sm:$0xff]
    %v1262 = vld [vmem:[%s10 + $0x8] sm:$0xff]
    %v1263 = vld [vmem:[%s10 + $0x10] sm:$0xff]
    %v1264 = vld [vmem:[%s10 + $0x18] sm:$0xff]
    %v1265 = vld [vmem:[%s10 + $0x20] sm:$0xff]
    %v1266 = vld [vmem:[%s10 + $0x28] sm:$0xff]
    %v1267 = vld [vmem:[%s10 + $0x30] sm:$0xff]
    %v1268 = vld [vmem:[%s10 + $0x38] sm:$0xff]
    %v1269 = vld [vmem:[%s10 + $0x40] sm:$0xff]
    %v1270 = vld [vmem:[%s10 + $0x48] sm:$0xff]
    %v1271 = vld [vmem:[%s10 + $0x50] sm:$0xff]
    %v1272 = vld [vmem:[%s10 + $0x58] sm:$0xff]
    %v1273 = vld [vmem:[%s10 + $0x60] sm:$0xff]
    %v1274 = vld [vmem:[%s10 + $0x68] sm:$0xff]
    %v1275 = vld [vmem:[%s10 + $0x70] sm:$0xff]
    %v1276 = vld [vmem:[%s10 + $0x78] sm:$0xff]
    %v1277 = vld [vmem:[%s11] sm:$0x1]
    %v1279 = vlaneseq
    %v1280 = vshrl.u32 %v1279, 7
    %v1281 = vsub.s32 0, %v1280
    %v1282 = vrot.slane %v1277, %v1281
    %1284 = vmatprep.subr.mxu0 0.0
    %1285 = vmatpush1.msra.mxu0 %v1261
    %1286 = vmatprep.subr.mxu0 0.0
    %1287 = vmatpush1.msra.mxu0 %v1262
    %1288 = vmatprep.subr.mxu0 0.0
    %1289 = vmatpush1.msra.mxu0 %v1263
    %1290 = vmatprep.subr.mxu0 0.0
    %1291 = vmatpush1.msra.mxu0 %v1264
    %1292 = vmatprep.subr.mxu0 0.0
    %1293 = vmatpush1.msra.mxu0 %v1265
    %1294 = vmatprep.subr.mxu0 0.0
    %1295 = vmatpush1.msra.mxu0 %v1266
    %1296 = vmatprep.subr.mxu0 0.0
    %1297 = vmatpush1.msra.mxu0 %v1267
    %1298 = vmatprep.subr.mxu0 0.0
    %1299 = vmatpush1.msra.mxu0 %v1268
    %1300 = vmatprep.subr.mxu0 0.0
    %1301 = vmatpush1.msra.mxu0 %v1269
    %1302 = vmatprep.subr.mxu0 0.0
    %1303 = vmatpush1.msra.mxu0 %v1270
    %1304 = vmatprep.subr.mxu0 0.0
    %1305 = vmatpush1.msra.mxu0 %v1271
    %1306 = vmatprep.subr.mxu0 0.0
    %1307 = vmatpush1.msra.mxu0 %v1272
    %1308 = vmatprep.subr.mxu0 0.0
    %1309 = vmatpush1.msra.mxu0 %v1273
    %1310 = vmatprep.subr.mxu0 0.0
    %1311 = vmatpush1.msra.mxu0 %v1274
    %1312 = vmatprep.subr.mxu0 0.0
    %1313 = vmatpush1.msra.mxu0 %v1275
    %1314 = vmatprep.subr.mxu0 0.0
    %1315 = vmatpush1.msra.mxu0 %v1276
    %1316 = vmatprep.subr.mxu0 0.0
    %1317 = vmatpush1.msra.mxu0 0.0
    %1318 = vmatprep.subr.mxu0 0.0
    %1319 = vmatpush1.msra.mxu0 0.0
    %1320 = vmatprep.subr.mxu0 0.0
    %1321 = vmatpush1.msra.mxu0 0.0
    %1322 = vmatprep.subr.mxu0 0.0
    %1323 = vmatpush1.msra.mxu0 0.0
    %1324 = vmatprep.subr.mxu0 0.0
    %1325 = vmatpush1.msra.mxu0 0.0
    %1326 = vmatprep.subr.mxu0 0.0
    %1327 = vmatpush1.msra.mxu0 0.0
    %1328 = vmatprep.subr.mxu0 0.0
    %1329 = vmatpush1.msra.mxu0 0.0
    %1330 = vmatprep.subr.mxu0 0.0
    %1331 = vmatpush1.msra.mxu0 0.0
    %1332 = vmatprep.subr.mxu0 0.0
    %1333 = vmatpush1.msra.mxu0 0.0
    %1334 = vmatprep.subr.mxu0 0.0
    %1335 = vmatpush1.msra.mxu0 0.0
    %1336 = vmatprep.subr.mxu0 0.0
    %1337 = vmatpush1.msra.mxu0 0.0
    %1338 = vmatprep.subr.mxu0 0.0
    %1339 = vmatpush1.msra.mxu0 0.0
    %1340 = vmatprep.subr.mxu0 0.0
    %1341 = vmatpush1.msra.mxu0 0.0
    %1342 = vmatprep.subr.mxu0 0.0
    %1343 = vmatpush1.msra.mxu0 0.0
    %1344 = vmatprep.subr.mxu0 0.0
    %1345 = vmatpush1.msra.mxu0 0.0
    %1346 = vmatprep.subr.mxu0 0.0
    %1347 = vmatpush1.msra.mxu0 0.0
    %1348 = vmatprep.mubr.f32.mxu0 0.0
    %1349 = vmatmul.mubr.f32.gmra.mrb[0].mxu0 %v1259
    %v1350 = vpop.f32.mrb[0].mxu0
    %v1351 = vadd.f32 %v1282, %v1350
    %v1352 = vpop.f32.mrb[0].mxu0
    %1353 = vmatprep.mubr.f32.mxu0 0.0
    %1354 = vmatmul.mubr.f32.gmra.mrb[0].mxu0 %v1260
    %v1355 = vpop.f32.mrb[0].mxu0
    %v1356 = vadd.f32 %v1282, %v1355
    %v1357 = vpop.f32.mrb[0].mxu0
    %1358 = vdwg.mxu0
    %v1359 = vadd.f32 %v1121, %v1351
    %v1360 = vadd.f32 %v1122, %v1356
    %1361 = vst.msk [vmem:[#allocation2] sm:$0xff] %vm59, %v1359
    %1362 = vst.msk [vmem:[#allocation2 + $0x8] sm:$0xff] %vm59, %v1360
    // Predicated region
    $region50: #{tpu_custom_call.1} parent=1 // pred_check
      _
    $region51: #{tpu_custom_call.1} parent=1 // pred_check_branch
      %1364 = sbr.rel (0) target = $region53
    $region52: #{tpu_custom_call.1} parent=1 // pred_region
      %s1366 = ssub.s32 256, 256
      %1367 = vsyncadd [#allocation3], %s1366
      %s1368 = sshll.u32 [#allocation2], 4
      %s1369 = int_to_ptr.vmem [resolvable:$true] %s1368
      %1374 = dma.vmem_to_hbm [thread:$0]  %s1369, 256, %s12, [#allocation3], 128, 128, 8
    $region53: #{tpu_custom_call.1} parent=1 // pred_fallthru
      _
    // Predicated region
    $region54: #{tpu_custom_call.1} parent=1 // pred_check
      _
    $region55: #{tpu_custom_call.1} parent=1 // pred_check_branch
      %1376 = sbr.rel (0) target = $region57
    $region56: #{tpu_custom_call.1} parent=1 // pred_region
      %1377 = dma.done [#allocation3], 256
    $region57: #{tpu_custom_call.1} parent=1 // pred_fallthru
      _
    %1378 = vsyncpa [#allocation3], 1

</llo_original>
